<compile_context>
chip_gen: v5e
topology: v5e:2x2
jax: 0.10.0
libtpu: 0.0.40
codegen_flags: <defaults>
</compile_context>

<pallas_src>
import jax
import jax.numpy as jnp
from jax.experimental import pallas as pl
from jax.experimental.pallas import tpu as pltpu


# ---------------------------------------------------------------------------
# Pallas kernels
# ---------------------------------------------------------------------------
def _conv_relu_pool_kernel(x_ref, w_ref, b_ref, o_ref):
    """Fused 3x3 conv (as matmul) + bias + ReLU + 2x2 maxpool.

    x_ref: (1, 4, Mo, K)  im2col patches, pool-tap-major, bf16
    w_ref: (K, Cout)      bf16
    b_ref: (1, Cout)      f32
    o_ref: (1, Mo, Cout)  bf16  (pooled output)

    relu(max_t(conv_t) + b) == maxpool(relu(conv + b)) since +b and relu are
    monotone, so bias/ReLU are applied once after the 4-way max.
    """
    w = w_ref[...]
    acc = jnp.dot(x_ref[0, 0], w, preferred_element_type=jnp.float32)
    for t in range(1, 4):  # short static loop, unrolled
        acc = jnp.maximum(
            acc, jnp.dot(x_ref[0, t], w, preferred_element_type=jnp.float32))
    o_ref[0] = jnp.maximum(acc + b_ref[...], 0.0).astype(o_ref.dtype)


def _classifier_kernel(x_ref, w1_ref, b1_ref, w2_ref, b2_ref, w3_ref, b3_ref,
                       o_ref):
    """Fused fc1+ReLU -> fc2+ReLU -> fc3 (Dropout == identity at inference)."""
    h = jnp.dot(x_ref[...], w1_ref[...],
                preferred_element_type=jnp.float32) + b1_ref[...]
    h = jnp.maximum(h, 0.0).astype(w2_ref.dtype)
    h = jnp.dot(h, w2_ref[...],
                preferred_element_type=jnp.float32) + b2_ref[...]
    h = jnp.maximum(h, 0.0).astype(w3_ref.dtype)
    o_ref[...] = jnp.dot(h, w3_ref[...],
                         preferred_element_type=jnp.float32) + b3_ref[...]


# ---------------------------------------------------------------------------
# Glue (plain JAX): im2col with pool-tap-major layout
# ---------------------------------------------------------------------------
def _im2col_3x3_pool_taps(x):
    """x: (N, H, W, C) NHWC -> (N, 4, (H//2)*(W//2), 9*C).

    For each 2x2-pool output position, the leading 4-axis holds the im2col
    patches (3x3 window, pad=1, stride=1) of the 4 conv-output pixels covered
    by that pool window.  K axis is 3x3-tap-major / channel-minor, matching
    the (kh, kw, cin, cout) weight reshape.
    """
    N, H, W, C = x.shape
    Ho, Wo = H // 2, W // 2
    xp = jnp.pad(x, ((0, 0), (1, 1), (1, 1), (0, 0)))
    cols = [xp[:, dy:dy + H, dx:dx + W, :] for dy in range(3) for dx in range(3)]
    patches = jnp.concatenate(cols, axis=-1)                       # (N, H, W, 9C)
    taps = [patches[:, py::2, px::2, :] for py in range(2) for px in range(2)]
    return jnp.stack(taps, axis=1).reshape(N, 4, Ho * Wo, 9 * C)


# ---------------------------------------------------------------------------
# Wrappers around pallas_call
# ---------------------------------------------------------------------------
def conv3x3_relu_maxpool(x, w_mat, b_row):
    """x: NHWC bf16; w_mat: (9*Cin, Cout) bf16; b_row: (1, Cout) f32 -> NHWC bf16."""
    N, H, W, C = x.shape
    K, Cout = w_mat.shape
    assert K == 9 * C and H % 2 == 0 and W % 2 == 0
    Ho, Wo = H // 2, W // 2
    Mo = Ho * Wo
    patches = _im2col_3x3_pool_taps(x)                             # (N, 4, Mo, K)
    # NOTE: trailing block dims equal the full array dims, so no (8,128)
    # divisibility requirement applies; grid is over the batch only.
    out = pl.pallas_call(
        _conv_relu_pool_kernel,
        out_shape=jax.ShapeDtypeStruct((N, Mo, Cout), jnp.bfloat16),
        grid=(N,),
        in_specs=[
            pl.BlockSpec((1, 4, Mo, K), lambda n: (n, 0, 0, 0)),
            pl.BlockSpec((K, Cout), lambda n: (0, 0)),
            pl.BlockSpec((1, Cout), lambda n: (0, 0)),
        ],
        out_specs=pl.BlockSpec((1, Mo, Cout), lambda n: (n, 0, 0)),
        compiler_params=pltpu.CompilerParams(
            dimension_semantics=("parallel",)),  # lets v7x split batch over 2 TCs
    )(patches, w_mat, b_row)
    return out.reshape(N, Ho, Wo, Cout)


def classifier(x, p):
    """x: (N, 7*7*C) bf16 (NHWC-flat order) -> (N, num_classes) f32."""
    N, K = x.shape
    H1 = p["fc1_w"].shape[1]
    H2 = p["fc2_w"].shape[1]
    NC = p["fc3_w"].shape[1]
    return pl.pallas_call(
        _classifier_kernel,
        out_shape=jax.ShapeDtypeStruct((N, NC), jnp.float32),
        grid=(1,),
        in_specs=[
            pl.BlockSpec((N, K), lambda i: (0, 0)),
            pl.BlockSpec((K, H1), lambda i: (0, 0)),
            pl.BlockSpec((1, H1), lambda i: (0, 0)),
            pl.BlockSpec((H1, H2), lambda i: (0, 0)),
            pl.BlockSpec((1, H2), lambda i: (0, 0)),
            pl.BlockSpec((H2, NC), lambda i: (0, 0)),
            pl.BlockSpec((1, NC), lambda i: (0, 0)),
        ],
        out_specs=pl.BlockSpec((N, NC), lambda i: (0, 0)),
    )(x, p["fc1_w"], p["fc1_b"], p["fc2_w"], p["fc2_b"], p["fc3_w"], p["fc3_b"])


# ---------------------------------------------------------------------------
# VGG forward
# ---------------------------------------------------------------------------
def vgg_forward(x_nchw, p):
    # input NCHW -> NHWC internally (channels on the lane dim); bf16 MXU inputs
    x = jnp.transpose(x_nchw, (0, 2, 3, 1)).astype(jnp.bfloat16)

    # features: two fused (conv + bias + ReLU + maxpool2x2) blocks
    x = conv3x3_relu_maxpool(x, p["conv1_w"], p["conv1_b"])   # (N, 14, 14, 16)
    x = conv3x3_relu_maxpool(x, p["conv2_w"], p["conv2_b"])   # (N,  7,  7, 32)

    # AdaptiveAvgPool2d((7,7)) is the identity for a 7x7 feature map -> skip it.
    N, H, W, C = x.shape
    # TODO(synk): general AdaptiveAvgPool2d for non-7x7 feature maps not implemented.
    assert H == 7 and W == 7

    # Flatten in NHWC order; fc1 weight rows were pre-permuted from torch's
    # NCHW x.view(N, -1) order, so no activation transpose is needed here.
    x = x.reshape(N, H * W * C)

    # fused classifier (Dropout == identity at inference)
    return classifier(x, p)


# ---------------------------------------------------------------------------
# Deterministic parameter init (mirrors _initialize_weights, torch layouts)
# ---------------------------------------------------------------------------
def init_params(key, num_classes=10):
    ks = jax.random.split(key, 5)

    def kaiming_conv(k, cout, cin):
        # kaiming_normal_, mode='fan_out', relu: std = sqrt(2 / (cout*kh*kw))
        std = (2.0 / (cout * 9)) ** 0.5
        return std * jax.random.normal(k, (cout, cin, 3, 3), jnp.float32)

    def linear(k, dout, din):
        return 0.01 * jax.random.normal(k, (dout, din), jnp.float32)

    c_feat, hidden = 32, 128
    return {
        "conv1_w": kaiming_conv(ks[0], 16, 3),
        "conv1_b": jnp.zeros((16,), jnp.float32),
        "conv2_w": kaiming_conv(ks[1], c_feat, 16),
        "conv2_b": jnp.zeros((c_feat,), jnp.float32),
        "fc1_w": linear(ks[2], hidden, c_feat * 7 * 7),
        "fc1_b": jnp.zeros((hidden,), jnp.float32),
        "fc2_w": linear(ks[3], hidden, hidden),
        "fc2_b": jnp.zeros((hidden,), jnp.float32),
        "fc3_w": linear(ks[4], num_classes, hidden),
        "fc3_b": jnp.zeros((num_classes,), jnp.float32),
    }


def prepare_params(params):
    """One-time layout/dtype prep (outside the hot path):
      * conv weights -> (9*Cin, Cout) matmul layout, bf16 (kh,kw major / cin minor
        matching the im2col K order)
      * fc weights   -> (K, N) layout so there is no runtime .T
      * fc1 rows permuted from torch's NCHW-flatten order (c, h, w) to our
        NHWC-flatten order (h, w, c) -> no activation transpose before classifier
      * biases       -> (1, N) f32 rows (added to the f32 accumulator in-kernel)
    """
    def conv_w(w):
        cout, cin = w.shape[0], w.shape[1]
        return jnp.transpose(w, (2, 3, 1, 0)).reshape(9 * cin, cout).astype(jnp.bfloat16)

    def bias_row(b):
        return b.reshape(1, -1).astype(jnp.float32)

    hidden, fc1_in = params["fc1_w"].shape
    c_feat = fc1_in // 49
    fc1_kn = jnp.transpose(
        params["fc1_w"].reshape(hidden, c_feat, 7, 7), (2, 3, 1, 0)
    ).reshape(49 * c_feat, hidden)

    return {
        "conv1_w": conv_w(params["conv1_w"]), "conv1_b": bias_row(params["conv1_b"]),
        "conv2_w": conv_w(params["conv2_w"]), "conv2_b": bias_row(params["conv2_b"]),
        "fc1_w": fc1_kn.astype(jnp.bfloat16), "fc1_b": bias_row(params["fc1_b"]),
        "fc2_w": params["fc2_w"].T.astype(jnp.bfloat16), "fc2_b": bias_row(params["fc2_b"]),
        "fc3_w": params["fc3_w"].T.astype(jnp.bfloat16), "fc3_b": bias_row(params["fc3_b"]),
    }


if __name__ == "__main__":
    key = jax.random.PRNGKey(0)
    kx, kp = jax.random.split(key)
    x = jax.random.normal(kx, (2, 3, 28, 28), jnp.float32)  # NCHW like PyTorch
    params = init_params(kp, num_classes=10)
    prepped = prepare_params(params)  # one-time weight relayout / bf16 cast

    out = jax.jit(vgg_forward)(x, prepped)
    out = jax.block_until_ready(out)
    assert out.shape == (2, 10) and out.dtype == jnp.float32
    print("KERNEL_OK")
</pallas_src>

<mosaic_0001>
module attributes {stable_mosaic.version = 11 : i64} {
  func.func @_conv_relu_pool_kernel(%arg0: i32, %arg1: memref<1x4x196x27xbf16, #tpu.memory_space<vmem>>, %arg2: memref<27x16xbf16, #tpu.memory_space<vmem>>, %arg3: memref<1x16xf32, #tpu.memory_space<vmem>>, %arg4: memref<1x196x16xbf16, #tpu.memory_space<vmem>>) attributes {dimension_semantics = [#tpu.dimension_semantics<parallel>], iteration_bounds = array<i64: 2>, scalar_prefetch = 0 : i64, scratch_operands = 0 : i64, tpu.core_type = #tpu.core_type<tc>, window_params = [{transform_indices = @transform_0, window_bounds = array<i64: 1, 4, 196, 27>}, {pipeline_mode = #tpu.pipeline_mode<synchronous>, transform_indices = @transform_1, window_bounds = array<i64: 27, 16>}, {pipeline_mode = #tpu.pipeline_mode<synchronous>, transform_indices = @transform_2, window_bounds = array<i64: 1, 16>}, {transform_indices = @transform_3, window_bounds = array<i64: 1, 196, 16>}]} {
    %c0 = arith.constant 0 : index
    %c0_0 = arith.constant 0 : index
    %0 = vector.load %arg2[%c0, %c0_0] : memref<27x16xbf16, #tpu.memory_space<vmem>>, vector<27x16xbf16>
    %c0_1 = arith.constant 0 : index
    %c0_2 = arith.constant 0 : index
    %c0_3 = arith.constant 0 : index
    %c0_4 = arith.constant 0 : index
    %1 = vector.load %arg1[%c0_1, %c0_2, %c0_3, %c0_4] : memref<1x4x196x27xbf16, #tpu.memory_space<vmem>>, vector<1x1x196x27xbf16>
    %2 = vector.shape_cast %1 : vector<1x1x196x27xbf16> to vector<196x27xbf16>
    %cst = arith.constant dense<0.000000e+00> : vector<196x16xf32>
    %3 = tpu.matmul %2, %0, %cst {dimension_numbers = #tpu.dot_dimension_numbers<[1], [0], [0], [1], [0, 0, 1, 1], [], []>} : vector<196x27xbf16>, vector<27x16xbf16>, vector<196x16xf32> -> vector<196x16xf32>
    %c0_5 = arith.constant 0 : index
    %c1 = arith.constant 1 : index
    %c0_6 = arith.constant 0 : index
    %c0_7 = arith.constant 0 : index
    %4 = vector.load %arg1[%c0_5, %c1, %c0_6, %c0_7] : memref<1x4x196x27xbf16, #tpu.memory_space<vmem>>, vector<1x1x196x27xbf16>
    %5 = vector.shape_cast %4 : vector<1x1x196x27xbf16> to vector<196x27xbf16>
    %cst_8 = arith.constant dense<0.000000e+00> : vector<196x16xf32>
    %6 = tpu.matmul %5, %0, %cst_8 {dimension_numbers = #tpu.dot_dimension_numbers<[1], [0], [0], [1], [0, 0, 1, 1], [], []>} : vector<196x27xbf16>, vector<27x16xbf16>, vector<196x16xf32> -> vector<196x16xf32>
    %7 = arith.maximumf %3, %6 : vector<196x16xf32>
    %c0_9 = arith.constant 0 : index
    %c2 = arith.constant 2 : index
    %c0_10 = arith.constant 0 : index
    %c0_11 = arith.constant 0 : index
    %8 = vector.load %arg1[%c0_9, %c2, %c0_10, %c0_11] : memref<1x4x196x27xbf16, #tpu.memory_space<vmem>>, vector<1x1x196x27xbf16>
    %9 = vector.shape_cast %8 : vector<1x1x196x27xbf16> to vector<196x27xbf16>
    %cst_12 = arith.constant dense<0.000000e+00> : vector<196x16xf32>
    %10 = tpu.matmul %9, %0, %cst_12 {dimension_numbers = #tpu.dot_dimension_numbers<[1], [0], [0], [1], [0, 0, 1, 1], [], []>} : vector<196x27xbf16>, vector<27x16xbf16>, vector<196x16xf32> -> vector<196x16xf32>
    %11 = arith.maximumf %7, %10 : vector<196x16xf32>
    %c0_13 = arith.constant 0 : index
    %c3 = arith.constant 3 : index
    %c0_14 = arith.constant 0 : index
    %c0_15 = arith.constant 0 : index
    %12 = vector.load %arg1[%c0_13, %c3, %c0_14, %c0_15] : memref<1x4x196x27xbf16, #tpu.memory_space<vmem>>, vector<1x1x196x27xbf16>
    %13 = vector.shape_cast %12 : vector<1x1x196x27xbf16> to vector<196x27xbf16>
    %cst_16 = arith.constant dense<0.000000e+00> : vector<196x16xf32>
    %14 = tpu.matmul %13, %0, %cst_16 {dimension_numbers = #tpu.dot_dimension_numbers<[1], [0], [0], [1], [0, 0, 1, 1], [], []>} : vector<196x27xbf16>, vector<27x16xbf16>, vector<196x16xf32> -> vector<196x16xf32>
    %15 = arith.maximumf %11, %14 : vector<196x16xf32>
    %c0_17 = arith.constant 0 : index
    %c0_18 = arith.constant 0 : index
    %16 = vector.load %arg3[%c0_17, %c0_18] : memref<1x16xf32, #tpu.memory_space<vmem>>, vector<1x16xf32>
    %17 = vector.broadcast %16 : vector<1x16xf32> to vector<196x16xf32>
    %18 = arith.addf %15, %17 : vector<196x16xf32>
    %cst_19 = arith.constant 0.000000e+00 : f32
    %19 = vector.broadcast %cst_19 : f32 to vector<196x16xf32>
    %20 = arith.maximumf %18, %19 : vector<196x16xf32>
    %21 = arith.truncf %20 : vector<196x16xf32> to vector<196x16xbf16>
    %c0_20 = arith.constant 0 : index
    %c0_21 = arith.constant 0 : index
    %c0_22 = arith.constant 0 : index
    %22 = vector.load %arg4[%c0_20, %c0_21, %c0_22] : memref<1x196x16xbf16, #tpu.memory_space<vmem>>, vector<1x196x16xbf16>
    %23 = vector.shape_cast %22 : vector<1x196x16xbf16> to vector<196x16xbf16>
    %24 = vector.shape_cast %21 : vector<196x16xbf16> to vector<1x196x16xbf16>
    tpu.vector_store %arg4[%c0_20, %c0_21, %c0_22], %24 {strides = array<i32>} : memref<1x196x16xbf16, #tpu.memory_space<vmem>>, vector<1x196x16xbf16>,
    return
  }
  func.func @transform_0(%arg0: i32) -> (i32, i32, i32, i32) {
    %c0_i32 = arith.constant 0 : i32
    %c0_i32_0 = arith.constant 0 : i32
    %c0_i32_1 = arith.constant 0 : i32
    %c0_i32_2 = arith.constant 0 : i32
    return %arg0, %c0_i32, %c0_i32_0, %c0_i32_1 : i32, i32, i32, i32
  }
  func.func @transform_1(%arg0: i32) -> (i32, i32) {
    %c0_i32 = arith.constant 0 : i32
    %c0_i32_0 = arith.constant 0 : i32
    %c0_i32_1 = arith.constant 0 : i32
    return %c0_i32, %c0_i32_0 : i32, i32
  }
  func.func @transform_2(%arg0: i32) -> (i32, i32) {
    %c0_i32 = arith.constant 0 : i32
    %c0_i32_0 = arith.constant 0 : i32
    %c0_i32_1 = arith.constant 0 : i32
    return %c0_i32, %c0_i32_0 : i32, i32
  }
  func.func @transform_3(%arg0: i32) -> (i32, i32, i32) {
    %c0_i32 = arith.constant 0 : i32
    %c0_i32_0 = arith.constant 0 : i32
    %c0_i32_1 = arith.constant 0 : i32
    return %arg0, %c0_i32, %c0_i32_0 : i32, i32, i32
  }
}

module attributes {stable_mosaic.version = 11 : i64} {
  func.func @_conv_relu_pool_kernel(%arg0: i32, %arg1: memref<1x4x49x144xbf16, #tpu.memory_space<vmem>>, %arg2: memref<144x32xbf16, #tpu.memory_space<vmem>>, %arg3: memref<1x32xf32, #tpu.memory_space<vmem>>, %arg4: memref<1x49x32xbf16, #tpu.memory_space<vmem>>) attributes {dimension_semantics = [#tpu.dimension_semantics<parallel>], iteration_bounds = array<i64: 2>, scalar_prefetch = 0 : i64, scratch_operands = 0 : i64, tpu.core_type = #tpu.core_type<tc>, window_params = [{transform_indices = @transform_0, window_bounds = array<i64: 1, 4, 49, 144>}, {pipeline_mode = #tpu.pipeline_mode<synchronous>, transform_indices = @transform_1, window_bounds = array<i64: 144, 32>}, {pipeline_mode = #tpu.pipeline_mode<synchronous>, transform_indices = @transform_2, window_bounds = array<i64: 1, 32>}, {transform_indices = @transform_3, window_bounds = array<i64: 1, 49, 32>}]} {
    %c0 = arith.constant 0 : index
    %c0_0 = arith.constant 0 : index
    %0 = vector.load %arg2[%c0, %c0_0] : memref<144x32xbf16, #tpu.memory_space<vmem>>, vector<144x32xbf16>
    %c0_1 = arith.constant 0 : index
    %c0_2 = arith.constant 0 : index
    %c0_3 = arith.constant 0 : index
    %c0_4 = arith.constant 0 : index
    %1 = vector.load %arg1[%c0_1, %c0_2, %c0_3, %c0_4] : memref<1x4x49x144xbf16, #tpu.memory_space<vmem>>, vector<1x1x49x144xbf16>
    %2 = vector.shape_cast %1 : vector<1x1x49x144xbf16> to vector<49x144xbf16>
    %cst = arith.constant dense<0.000000e+00> : vector<49x32xf32>
    %3 = tpu.matmul %2, %0, %cst {dimension_numbers = #tpu.dot_dimension_numbers<[1], [0], [0], [1], [0, 0, 1, 1], [], []>} : vector<49x144xbf16>, vector<144x32xbf16>, vector<49x32xf32> -> vector<49x32xf32>
    %c0_5 = arith.constant 0 : index
    %c1 = arith.constant 1 : index
    %c0_6 = arith.constant 0 : index
    %c0_7 = arith.constant 0 : index
    %4 = vector.load %arg1[%c0_5, %c1, %c0_6, %c0_7] : memref<1x4x49x144xbf16, #tpu.memory_space<vmem>>, vector<1x1x49x144xbf16>
    %5 = vector.shape_cast %4 : vector<1x1x49x144xbf16> to vector<49x144xbf16>
    %cst_8 = arith.constant dense<0.000000e+00> : vector<49x32xf32>
    %6 = tpu.matmul %5, %0, %cst_8 {dimension_numbers = #tpu.dot_dimension_numbers<[1], [0], [0], [1], [0, 0, 1, 1], [], []>} : vector<49x144xbf16>, vector<144x32xbf16>, vector<49x32xf32> -> vector<49x32xf32>
    %7 = arith.maximumf %3, %6 : vector<49x32xf32>
    %c0_9 = arith.constant 0 : index
    %c2 = arith.constant 2 : index
    %c0_10 = arith.constant 0 : index
    %c0_11 = arith.constant 0 : index
    %8 = vector.load %arg1[%c0_9, %c2, %c0_10, %c0_11] : memref<1x4x49x144xbf16, #tpu.memory_space<vmem>>, vector<1x1x49x144xbf16>
    %9 = vector.shape_cast %8 : vector<1x1x49x144xbf16> to vector<49x144xbf16>
    %cst_12 = arith.constant dense<0.000000e+00> : vector<49x32xf32>
    %10 = tpu.matmul %9, %0, %cst_12 {dimension_numbers = #tpu.dot_dimension_numbers<[1], [0], [0], [1], [0, 0, 1, 1], [], []>} : vector<49x144xbf16>, vector<144x32xbf16>, vector<49x32xf32> -> vector<49x32xf32>
    %11 = arith.maximumf %7, %10 : vector<49x32xf32>
    %c0_13 = arith.constant 0 : index
    %c3 = arith.constant 3 : index
    %c0_14 = arith.constant 0 : index
    %c0_15 = arith.constant 0 : index
    %12 = vector.load %arg1[%c0_13, %c3, %c0_14, %c0_15] : memref<1x4x49x144xbf16, #tpu.memory_space<vmem>>, vector<1x1x49x144xbf16>
    %13 = vector.shape_cast %12 : vector<1x1x49x144xbf16> to vector<49x144xbf16>
    %cst_16 = arith.constant dense<0.000000e+00> : vector<49x32xf32>
    %14 = tpu.matmul %13, %0, %cst_16 {dimension_numbers = #tpu.dot_dimension_numbers<[1], [0], [0], [1], [0, 0, 1, 1], [], []>} : vector<49x144xbf16>, vector<144x32xbf16>, vector<49x32xf32> -> vector<49x32xf32>
    %15 = arith.maximumf %11, %14 : vector<49x32xf32>
    %c0_17 = arith.constant 0 : index
    %c0_18 = arith.constant 0 : index
    %16 = vector.load %arg3[%c0_17, %c0_18] : memref<1x32xf32, #tpu.memory_space<vmem>>, vector<1x32xf32>
    %17 = vector.broadcast %16 : vector<1x32xf32> to vector<49x32xf32>
    %18 = arith.addf %15, %17 : vector<49x32xf32>
    %cst_19 = arith.constant 0.000000e+00 : f32
    %19 = vector.broadcast %cst_19 : f32 to vector<49x32xf32>
    %20 = arith.maximumf %18, %19 : vector<49x32xf32>
    %21 = arith.truncf %20 : vector<49x32xf32> to vector<49x32xbf16>
    %c0_20 = arith.constant 0 : index
    %c0_21 = arith.constant 0 : index
    %c0_22 = arith.constant 0 : index
    %22 = vector.load %arg4[%c0_20, %c0_21, %c0_22] : memref<1x49x32xbf16, #tpu.memory_space<vmem>>, vector<1x49x32xbf16>
    %23 = vector.shape_cast %22 : vector<1x49x32xbf16> to vector<49x32xbf16>
    %24 = vector.shape_cast %21 : vector<49x32xbf16> to vector<1x49x32xbf16>
    tpu.vector_store %arg4[%c0_20, %c0_21, %c0_22], %24 {strides = array<i32>} : memref<1x49x32xbf16, #tpu.memory_space<vmem>>, vector<1x49x32xbf16>,
    return
  }
  func.func @transform_0(%arg0: i32) -> (i32, i32, i32, i32) {
    %c0_i32 = arith.constant 0 : i32
    %c0_i32_0 = arith.constant 0 : i32
    %c0_i32_1 = arith.constant 0 : i32
    %c0_i32_2 = arith.constant 0 : i32
    return %arg0, %c0_i32, %c0_i32_0, %c0_i32_1 : i32, i32, i32, i32
  }
  func.func @transform_1(%arg0: i32) -> (i32, i32) {
    %c0_i32 = arith.constant 0 : i32
    %c0_i32_0 = arith.constant 0 : i32
    %c0_i32_1 = arith.constant 0 : i32
    return %c0_i32, %c0_i32_0 : i32, i32
  }
  func.func @transform_2(%arg0: i32) -> (i32, i32) {
    %c0_i32 = arith.constant 0 : i32
    %c0_i32_0 = arith.constant 0 : i32
    %c0_i32_1 = arith.constant 0 : i32
    return %c0_i32, %c0_i32_0 : i32, i32
  }
  func.func @transform_3(%arg0: i32) -> (i32, i32, i32) {
    %c0_i32 = arith.constant 0 : i32
    %c0_i32_0 = arith.constant 0 : i32
    %c0_i32_1 = arith.constant 0 : i32
    return %arg0, %c0_i32, %c0_i32_0 : i32, i32, i32
  }
}

module attributes {stable_mosaic.version = 11 : i64} {
  func.func @_classifier_kernel(%arg0: i32, %arg1: memref<2x1568xbf16, #tpu.memory_space<vmem>>, %arg2: memref<1568x128xbf16, #tpu.memory_space<vmem>>, %arg3: memref<1x128xf32, #tpu.memory_space<vmem>>, %arg4: memref<128x128xbf16, #tpu.memory_space<vmem>>, %arg5: memref<1x128xf32, #tpu.memory_space<vmem>>, %arg6: memref<128x10xbf16, #tpu.memory_space<vmem>>, %arg7: memref<1x10xf32, #tpu.memory_space<vmem>>, %arg8: memref<2x10xf32, #tpu.memory_space<vmem>>) attributes {dimension_semantics = [#tpu.dimension_semantics<arbitrary>], iteration_bounds = array<i64: 1>, scalar_prefetch = 0 : i64, scratch_operands = 0 : i64, tpu.core_type = #tpu.core_type<tc>, window_params = [{pipeline_mode = #tpu.pipeline_mode<synchronous>, transform_indices = @transform_0, window_bounds = array<i64: 2, 1568>}, {pipeline_mode = #tpu.pipeline_mode<synchronous>, transform_indices = @transform_1, window_bounds = array<i64: 1568, 128>}, {pipeline_mode = #tpu.pipeline_mode<synchronous>, transform_indices = @transform_2, window_bounds = array<i64: 1, 128>}, {pipeline_mode = #tpu.pipeline_mode<synchronous>, transform_indices = @transform_3, window_bounds = array<i64: 128, 128>}, {pipeline_mode = #tpu.pipeline_mode<synchronous>, transform_indices = @transform_4, window_bounds = array<i64: 1, 128>}, {pipeline_mode = #tpu.pipeline_mode<synchronous>, transform_indices = @transform_5, window_bounds = array<i64: 128, 10>}, {pipeline_mode = #tpu.pipeline_mode<synchronous>, transform_indices = @transform_6, window_bounds = array<i64: 1, 10>}, {pipeline_mode = #tpu.pipeline_mode<synchronous>, transform_indices = @transform_7, window_bounds = array<i64: 2, 10>}]} {
    %c0 = arith.constant 0 : index
    %c0_0 = arith.constant 0 : index
    %0 = vector.load %arg1[%c0, %c0_0] : memref<2x1568xbf16, #tpu.memory_space<vmem>>, vector<2x1568xbf16>
    %c0_1 = arith.constant 0 : index
    %c0_2 = arith.constant 0 : index
    %1 = vector.load %arg2[%c0_1, %c0_2] : memref<1568x128xbf16, #tpu.memory_space<vmem>>, vector<1568x128xbf16>
    %cst = arith.constant dense<0.000000e+00> : vector<2x128xf32>
    %2 = tpu.matmul %0, %1, %cst {dimension_numbers = #tpu.dot_dimension_numbers<[1], [0], [0], [1], [0, 0, 1, 1], [], []>} : vector<2x1568xbf16>, vector<1568x128xbf16>, vector<2x128xf32> -> vector<2x128xf32>
    %c0_3 = arith.constant 0 : index
    %c0_4 = arith.constant 0 : index
    %3 = vector.load %arg3[%c0_3, %c0_4] : memref<1x128xf32, #tpu.memory_space<vmem>>, vector<1x128xf32>
    %4 = vector.broadcast %3 : vector<1x128xf32> to vector<2x128xf32>
    %5 = arith.addf %2, %4 : vector<2x128xf32>
    %cst_5 = arith.constant 0.000000e+00 : f32
    %6 = vector.broadcast %cst_5 : f32 to vector<2x128xf32>
    %7 = arith.maximumf %5, %6 : vector<2x128xf32>
    %8 = arith.truncf %7 : vector<2x128xf32> to vector<2x128xbf16>
    %c0_6 = arith.constant 0 : index
    %c0_7 = arith.constant 0 : index
    %9 = vector.load %arg4[%c0_6, %c0_7] : memref<128x128xbf16, #tpu.memory_space<vmem>>, vector<128x128xbf16>
    %cst_8 = arith.constant dense<0.000000e+00> : vector<2x128xf32>
    %10 = tpu.matmul %8, %9, %cst_8 {dimension_numbers = #tpu.dot_dimension_numbers<[1], [0], [0], [1], [0, 0, 1, 1], [], []>} : vector<2x128xbf16>, vector<128x128xbf16>, vector<2x128xf32> -> vector<2x128xf32>
    %c0_9 = arith.constant 0 : index
    %c0_10 = arith.constant 0 : index
    %11 = vector.load %arg5[%c0_9, %c0_10] : memref<1x128xf32, #tpu.memory_space<vmem>>, vector<1x128xf32>
    %12 = vector.broadcast %11 : vector<1x128xf32> to vector<2x128xf32>
    %13 = arith.addf %10, %12 : vector<2x128xf32>
    %cst_11 = arith.constant 0.000000e+00 : f32
    %14 = vector.broadcast %cst_11 : f32 to vector<2x128xf32>
    %15 = arith.maximumf %13, %14 : vector<2x128xf32>
    %16 = arith.truncf %15 : vector<2x128xf32> to vector<2x128xbf16>
    %c0_12 = arith.constant 0 : index
    %c0_13 = arith.constant 0 : index
    %17 = vector.load %arg6[%c0_12, %c0_13] : memref<128x10xbf16, #tpu.memory_space<vmem>>, vector<128x10xbf16>
    %cst_14 = arith.constant dense<0.000000e+00> : vector<2x10xf32>
    %18 = tpu.matmul %16, %17, %cst_14 {dimension_numbers = #tpu.dot_dimension_numbers<[1], [0], [0], [1], [0, 0, 1, 1], [], []>} : vector<2x128xbf16>, vector<128x10xbf16>, vector<2x10xf32> -> vector<2x10xf32>
    %c0_15 = arith.constant 0 : index
    %c0_16 = arith.constant 0 : index
    %19 = vector.load %arg7[%c0_15, %c0_16] : memref<1x10xf32, #tpu.memory_space<vmem>>, vector<1x10xf32>
    %20 = vector.broadcast %19 : vector<1x10xf32> to vector<2x10xf32>
    %21 = arith.addf %18, %20 : vector<2x10xf32>
    %c0_17 = arith.constant 0 : index
    %c0_18 = arith.constant 0 : index
    %22 = vector.load %arg8[%c0_17, %c0_18] : memref<2x10xf32, #tpu.memory_space<vmem>>, vector<2x10xf32>
    tpu.vector_store %arg8[%c0_17, %c0_18], %21 {strides = array<i32>} : memref<2x10xf32, #tpu.memory_space<vmem>>, vector<2x10xf32>,
    return
  }
  func.func @transform_0(%arg0: i32) -> (i32, i32) {
    %c0_i32 = arith.constant 0 : i32
    %c0_i32_0 = arith.constant 0 : i32
    %c0_i32_1 = arith.constant 0 : i32
    return %c0_i32, %c0_i32_0 : i32, i32
  }
  func.func @transform_1(%arg0: i32) -> (i32, i32) {
    %c0_i32 = arith.constant 0 : i32
    %c0_i32_0 = arith.constant 0 : i32
    %c0_i32_1 = arith.constant 0 : i32
    return %c0_i32, %c0_i32_0 : i32, i32
  }
  func.func @transform_2(%arg0: i32) -> (i32, i32) {
    %c0_i32 = arith.constant 0 : i32
    %c0_i32_0 = arith.constant 0 : i32
    %c0_i32_1 = arith.constant 0 : i32
    return %c0_i32, %c0_i32_0 : i32, i32
  }
  func.func @transform_3(%arg0: i32) -> (i32, i32) {
    %c0_i32 = arith.constant 0 : i32
    %c0_i32_0 = arith.constant 0 : i32
    %c0_i32_1 = arith.constant 0 : i32
    return %c0_i32, %c0_i32_0 : i32, i32
  }
  func.func @transform_4(%arg0: i32) -> (i32, i32) {
    %c0_i32 = arith.constant 0 : i32
    %c0_i32_0 = arith.constant 0 : i32
    %c0_i32_1 = arith.constant 0 : i32
    return %c0_i32, %c0_i32_0 : i32, i32
  }
  func.func @transform_5(%arg0: i32) -> (i32, i32) {
    %c0_i32 = arith.constant 0 : i32
    %c0_i32_0 = arith.constant 0 : i32
    %c0_i32_1 = arith.constant 0 : i32
    return %c0_i32, %c0_i32_0 : i32, i32
  }
  func.func @transform_6(%arg0: i32) -> (i32, i32) {
    %c0_i32 = arith.constant 0 : i32
    %c0_i32_0 = arith.constant 0 : i32
    %c0_i32_1 = arith.constant 0 : i32
    return %c0_i32, %c0_i32_0 : i32, i32
  }
  func.func @transform_7(%arg0: i32) -> (i32, i32) {
    %c0_i32 = arith.constant 0 : i32
    %c0_i32_0 = arith.constant 0 : i32
    %c0_i32_1 = arith.constant 0 : i32
    return %c0_i32, %c0_i32_0 : i32, i32
  }
}

</mosaic_0001>

<llo_original>
// kernel: vgg_forward.3
$region0: #{vgg_forward.3}
  #allocation0 [shape = 'u32[]', space=smem, size = 0x4, offset = 0x4, fixed_abs, tag = 'smem constant byte address 0x4 - core index']
  #allocation1 [shape = 'u32[72,128]{1,0:T(1,128)}', space=vmem, size = 0x9000, scoped, tag = 'internal scratch']
  %s0 = inlined_call_operand.vmem [shape: bf16[2,4,196,27], index: 0, kind: input, shape index: {}]
  %s1 = inlined_call_operand.vmem [shape: bf16[27,16], index: 1, kind: input, shape index: {}]
  %s2 = inlined_call_operand.vmem [shape: f32[1,16], index: 2, kind: input, shape index: {}]
  %s3 = inlined_call_operand.vmem [shape: bf16[2,196,16], index: 3, kind: output, shape index: {}]
  %s4 = sld [smem:[#allocation0]]
  $region45: #{vgg_forward.3} parent=0
    _
  %s6 = ssub.s32 1, %s4
  %s7 = scalar_select 0, %s6, %s4
  loop: start=0, step=1, limit=4
  $region2: #{vgg_forward.3} parent=0 // loop_pre_header
    _
  $region3: #{vgg_forward.3} parent=0 // loop_header
    %s9 = sphi 0, %s13
    %p10 = scmp.ge.s32.totalorder %s9, 4
    %s19 = sphi 0, %s21
    %s22 = sphi 0, %s19
    %s23 = sphi 0, %s22
    %s39 = sphi 0, %s23
    %s43 = sphi 0, %s43
    %s45 = sphi 0, %s43
    %s46 = sphi 0, %s45
    %s60 = sphi 0, %s46
    %s64 = sphi 0, %s64
    %s66 = sphi 0, %s64
    %s67 = sphi 0, %s66
    %s81 = sphi 0, %s67
    %s87 = sphi 0, %s89
    %s90 = sphi 0, %s87
    %s91 = sphi 0, %s90
    %s107 = sphi 0, %s91
  $region4: #{vgg_forward.3} parent=0 // loop_header_branch
    %12 = sbr.rel (%p10) target = $region8
  $region5: #{vgg_forward.3} parent=0 // loop_body
    %s14 = ssub.s32 %s9, 1
    %s15 = ssub.s32 %s9, 2
    %s16 = sadd.s32 %s9, 1
    %s17 = ssub.s32 %s9, %s16
    %p18 = scmp.eq.s32.totalorder %s17, 0
    %s20 = sadd.s32 %s19, 1
    %s21 = scalar_select %p18, %s19, %s20
    %p24 = pneg %p18
    %p25 = scmp.eq.s32.totalorder %s9, 1
    %p26 = por %p24, %p25
    %p27 = scmp.ne.s32.totalorder %s19, %s22
    %p28 = scmp.eq.s32.totalorder %s9, 0
    %p29 = por %p27, %p28
    %p30 = scmp.ne.s32.totalorder %s19, %s22
    %p31 = scmp.eq.s32.totalorder %s14, 1
    %p32 = por %p30, %p31
    %p33 = scmp.ne.s32.totalorder %s22, %s23
    %p34 = scmp.eq.s32.totalorder %s14, 0
    %p35 = por %p33, %p34
    %p36 = scmp.ne.s32.totalorder %s22, %s23
    %p37 = scmp.eq.s32.totalorder %s15, 1
    %p38 = por %p36, %p37
    %p40 = scmp.ne.s32.totalorder %s23, %s39
    %p41 = scmp.eq.s32.totalorder %s15, 0
    %p42 = por %p40, %p41
    %s44 = sadd.s32 %s43, 1
    %p47 = scmp.eq.s32.totalorder %s9, 1
    %p48 = scmp.ne.s32.totalorder %s43, %s45
    %p49 = scmp.eq.s32.totalorder %s9, 0
    %p50 = por %p48, %p49
    %p51 = scmp.ne.s32.totalorder %s43, %s45
    %p52 = scmp.eq.s32.totalorder %s14, 1
    %p53 = por %p51, %p52
    %p54 = scmp.ne.s32.totalorder %s45, %s46
    %p55 = scmp.eq.s32.totalorder %s14, 0
    %p56 = por %p54, %p55
    %p57 = scmp.ne.s32.totalorder %s45, %s46
    %p58 = scmp.eq.s32.totalorder %s15, 1
    %p59 = por %p57, %p58
    %p61 = scmp.ne.s32.totalorder %s46, %s60
    %p62 = scmp.eq.s32.totalorder %s15, 0
    %p63 = por %p61, %p62
    %s65 = sadd.s32 %s64, 1
    %p68 = scmp.eq.s32.totalorder %s9, 1
    %p69 = scmp.ne.s32.totalorder %s64, %s66
    %p70 = scmp.eq.s32.totalorder %s9, 0
    %p71 = por %p69, %p70
    %p72 = scmp.ne.s32.totalorder %s64, %s66
    %p73 = scmp.eq.s32.totalorder %s14, 1
    %p74 = por %p72, %p73
    %p75 = scmp.ne.s32.totalorder %s66, %s67
    %p76 = scmp.eq.s32.totalorder %s14, 0
    %p77 = por %p75, %p76
    %p78 = scmp.ne.s32.totalorder %s66, %s67
    %p79 = scmp.eq.s32.totalorder %s15, 1
    %p80 = por %p78, %p79
    %p82 = scmp.ne.s32.totalorder %s67, %s81
    %p83 = scmp.eq.s32.totalorder %s15, 0
    %p84 = por %p82, %p83
    %s85 = ssub.s32 %s9, %s16
    %p86 = scmp.eq.s32.totalorder %s85, 0
    %s88 = sadd.s32 %s87, 1
    %s89 = scalar_select %p86, %s87, %s88
    %p92 = pneg %p86
    %p93 = scmp.eq.s32.totalorder %s9, 1
    %p94 = por %p92, %p93
    %p95 = scmp.ne.s32.totalorder %s87, %s90
    %p96 = scmp.eq.s32.totalorder %s9, 0
    %p97 = por %p95, %p96
    %p98 = scmp.ne.s32.totalorder %s87, %s90
    %p99 = scmp.eq.s32.totalorder %s14, 1
    %p100 = por %p98, %p99
    %p101 = scmp.ne.s32.totalorder %s90, %s91
    %p102 = scmp.eq.s32.totalorder %s14, 0
    %p103 = por %p101, %p102
    %p104 = scmp.ne.s32.totalorder %s90, %s91
    %p105 = scmp.eq.s32.totalorder %s15, 1
    %p106 = por %p104, %p105
    %p108 = scmp.ne.s32.totalorder %s91, %s107
    %p109 = scmp.eq.s32.totalorder %s15, 0
    %p110 = por %p108, %p109
    %p111 = scmp.le.s32.totalorder 1, %s9
    %p112 = scmp.lt.s32.totalorder %s9, 3
    %p113 = pnand %p111, %p112
    %p114 = pneg %p113
    // Predicated region
    $region9: #{vgg_forward.3} parent=5 // pred_check
      _
    $region10: #{vgg_forward.3} parent=5 // pred_check_branch
      %116 = sbr.rel (%p113) target = $region12
    $region11: #{vgg_forward.3} parent=5 // pred_region
      %s117 = ssub.s32 %s9, 1
      // Predicated region
      $region13: #{vgg_forward.3} parent=11 // pred_check
        %p118 = pneg %p56
      $region14: #{vgg_forward.3} parent=11 // pred_check_branch
        %120 = sbr.rel (%p118) target = $region16
      $region15: #{vgg_forward.3} parent=11 // pred_region
        _
      $region16: #{vgg_forward.3} parent=11 // pred_fallthru
        _
      // Predicated region
      $region17: #{vgg_forward.3} parent=11 // pred_check
        %p121 = pneg %p77
      $region18: #{vgg_forward.3} parent=11 // pred_check_branch
        %123 = sbr.rel (%p121) target = $region20
      $region19: #{vgg_forward.3} parent=11 // pred_region
        _
      $region20: #{vgg_forward.3} parent=11 // pred_fallthru
        _
    $region12: #{vgg_forward.3} parent=5 // pred_fallthru
      _
    %p124 = scmp.lt.s32.totalorder %s9, 2
    // Predicated region
    $region21: #{vgg_forward.3} parent=5 // pred_check
      %p125 = pneg %p124
    $region22: #{vgg_forward.3} parent=5 // pred_check_branch
      %127 = sbr.rel (%p125) target = $region24
    $region23: #{vgg_forward.3} parent=5 // pred_region
      // Predicated region
      $region25: #{vgg_forward.3} parent=23 // pred_check
        %p128 = pneg %p29
      $region26: #{vgg_forward.3} parent=23 // pred_check_branch
        %130 = sbr.rel (%p128) target = $region28
      $region27: #{vgg_forward.3} parent=23 // pred_region
        %p131 = scmp.lt.s32.totalorder %s9, 1
        %s132 = scalar_select %p131, %s9, 1
        %s133 = smul.addr %s132, 100
        %s134 = smul.addr %s133, 4
        %s135 = scalar_lea.vmem %s0, %s134
      $region28: #{vgg_forward.3} parent=23 // pred_fallthru
        _
    $region24: #{vgg_forward.3} parent=5 // pred_fallthru
      _
    %p136 = scmp.le.s32.totalorder 1, %s9
    %p137 = scmp.lt.s32.totalorder %s9, 3
    %p138 = pnand %p136, %p137
    %p139 = pneg %p138
    // Predicated region
    $region29: #{vgg_forward.3} parent=5 // pred_check
      _
    $region30: #{vgg_forward.3} parent=5 // pred_check_branch
      %141 = sbr.rel (%p138) target = $region32
    $region31: #{vgg_forward.3} parent=5 // pred_region
      %s142 = ssub.s32 %s9, 1
      %p143 = scmp.lt.s32.totalorder %s14, 1
      %s144 = scalar_select %p143, %s14, 1
      %s145 = smul.addr %s144, 100
      %s146 = smul.addr %s145, 4
      %s147 = scalar_lea.vmem %s0, %s146
      %p148 = pneg %p35
      %p149 = pneg %p32
      %p150 = pneg %p56
      %p151 = pneg %p53
      %p152 = pneg %p77
      %p153 = pneg %p74
      %p154 = pneg %p103
      %p155 = pneg %p100
      %p156 = scmp.lt.s32.totalorder %s14, 1
      %s157 = scalar_select %p156, %s14, 1
      %s158 = smul.addr %s157, 25
      %s159 = smul.addr %s158, 4
      %s160 = scalar_lea.vmem %s3, %s159
      %p161 = scmp.lt.s32.totalorder %s14, 1
      %s162 = scalar_select %p161, %s14, 1
      %s163 = smul.addr %s162, 100
      %s164 = smul.addr %s163, 4
      %s165 = scalar_lea.vmem %s0, %s164
      %p166 = scmp.lt.s32.totalorder %s14, 1
      %s167 = scalar_select %p166, %s14, 1
      %s168 = smul.addr %s167, 25
      %s169 = smul.addr %s168, 4
      %s170 = scalar_lea.vmem %s3, %s169
      %v172 = vld [vmem:[%s1] sm:$0xf]
      %v173 = vld [vmem:[%s1 + $0x4] sm:$0xf]
      %v174 = vld [vmem:[%s1 + $0x8] sm:$0xf]
      %v175 = vld [vmem:[%s1 + $0xc] sm:$0x3]
      %v176 = vld [vmem:[%s165] sm:$0xf]
      %v177 = vld [vmem:[%s165 + $0x4] sm:$0xf]
      %v178 = vld [vmem:[%s165 + $0x8] sm:$0xf]
      %v179 = vld [vmem:[%s165 + $0xc] sm:$0xf]
      %v180 = vld [vmem:[%s165 + $0x10] sm:$0xf]
      %v181 = vld [vmem:[%s165 + $0x14] sm:$0xf]
      %v182 = vld [vmem:[%s165 + $0x18] sm:$0xf]
      %v183 = vld [vmem:[%s165 + $0x1c] sm:$0xf]
      %v184 = vld [vmem:[%s165 + $0x20] sm:$0xf]
      %v185 = vld [vmem:[%s165 + $0x24] sm:$0xf]
      %v186 = vld [vmem:[%s165 + $0x28] sm:$0xf]
      %v187 = vld [vmem:[%s165 + $0x2c] sm:$0xf]
      %v188 = vld [vmem:[%s165 + $0x30] sm:$0xf]
      %v189 = vld [vmem:[%s165 + $0x34] sm:$0xf]
      %v190 = vld [vmem:[%s165 + $0x38] sm:$0xf]
      %v191 = vld [vmem:[%s165 + $0x3c] sm:$0xf]
      %v192 = vld [vmem:[%s165 + $0x40] sm:$0xf]
      %v193 = vld [vmem:[%s165 + $0x44] sm:$0xf]
      %v194 = vld [vmem:[%s165 + $0x48] sm:$0xf]
      %v195 = vld [vmem:[%s165 + $0x4c] sm:$0xf]
      %v196 = vld [vmem:[%s165 + $0x50] sm:$0xf]
      %v197 = vld [vmem:[%s165 + $0x54] sm:$0xf]
      %v198 = vld [vmem:[%s165 + $0x58] sm:$0xf]
      %v199 = vld [vmem:[%s165 + $0x5c] sm:$0xf]
      %v200 = vld [vmem:[%s165 + $0x60] sm:$0x3]
      %v226 = vunpack.c.l.b16 %v176
      %v227 = vunpack.c.l.b16 %v177
      %v228 = vunpack.c.l.b16 %v178
      %v229 = vunpack.c.l.b16 %v179
      %v230 = vunpack.c.l.b16 %v180
      %v231 = vunpack.c.l.b16 %v181
      %v232 = vunpack.c.l.b16 %v182
      %v233 = vunpack.c.l.b16 %v183
      %v234 = vunpack.c.l.b16 %v184
      %v235 = vunpack.c.l.b16 %v185
      %v236 = vunpack.c.l.b16 %v186
      %v237 = vunpack.c.l.b16 %v187
      %v238 = vunpack.c.l.b16 %v188
      %v239 = vunpack.c.l.b16 %v189
      %v240 = vunpack.c.l.b16 %v190
      %v241 = vunpack.c.l.b16 %v191
      %v242 = vunpack.c.l.b16 %v192
      %v243 = vunpack.c.l.b16 %v193
      %v244 = vunpack.c.l.b16 %v194
      %v245 = vunpack.c.l.b16 %v195
      %v246 = vunpack.c.l.b16 %v196
      %v247 = vunpack.c.l.b16 %v197
      %v248 = vunpack.c.l.b16 %v198
      %v249 = vunpack.c.l.b16 %v199
      %v250 = vunpack.c.l.b16 %v200
      %v251 = vpack.c.b16 %v227, %v226
      %v252 = vpack.c.b16 %v229, %v228
      %v253 = vpack.c.b16 %v231, %v230
      %v254 = vpack.c.b16 %v233, %v232
      %v255 = vpack.c.b16 %v235, %v234
      %v256 = vpack.c.b16 %v237, %v236
      %v257 = vpack.c.b16 %v239, %v238
      %v258 = vpack.c.b16 %v241, %v240
      %v259 = vpack.c.b16 %v243, %v242
      %v260 = vpack.c.b16 %v245, %v244
      %v261 = vpack.c.b16 %v247, %v246
      %v262 = vpack.c.b16 %v249, %v248
      %v263 = vpack.c.b16 %v250, %v250
      %v268 = vunpack.c.l.b16 %v172
      %v269 = vunpack.c.l.b16 %v173
      %v270 = vunpack.c.l.b16 %v174
      %v271 = vunpack.c.l.b16 %v175
      %v272 = vpack.c.b16 %v269, %v268
      %v273 = vpack.c.b16 %v271, %v270
      %vm275 = vcmask 220160
      %v277 = vsel %vm275, %v251, 0
      %v280 = vsel %vm275, %v252, 0
      %v283 = vsel %vm275, %v253, 0
      %v286 = vsel %vm275, %v254, 0
      %v289 = vsel %vm275, %v255, 0
      %v292 = vsel %vm275, %v256, 0
      %v295 = vsel %vm275, %v257, 0
      %v298 = vsel %vm275, %v258, 0
      %v301 = vsel %vm275, %v259, 0
      %v304 = vsel %vm275, %v260, 0
      %v307 = vsel %vm275, %v261, 0
      %v310 = vsel %vm275, %v262, 0
      %v313 = vsel %vm275, %v263, 0
      %vm315 = vcmask 1044480
      %vm316 = vcmask 1045504
      %v317 = vsel %vm315, 4294967295, 65535
      %v318 = vsel %vm316, %v317, 0
      %v320 = vand.u32 %v273, %v318
      %322 = vmatpush.bf16.msra.mxu0 0
      %323 = vmatpush.bf16.msra.mxu0 0
      %324 = vmatpush.bf16.msra.mxu0 0
      %325 = vmatpush.bf16.msra.mxu0 0
      %326 = vmatpush.bf16.msra.mxu0 0
      %327 = vmatpush.bf16.msra.mxu0 0
      %328 = vmatpush.bf16.msra.mxu0 %v320
      %329 = vmatpush.bf16.msra.mxu0 %v272
      %330 = vmatmul.bf16.gmra.mxu0 %v277
      %v331 = vpop.f32.mrf.mxu0
      %v332 = vadd.f32 0.0, %v331
      %v333 = vpop.f32.mrf.mxu0
      %v334 = vadd.f32 0.0, %v333
      %335 = vmatmul.bf16.gmra.mxu0 %v280
      %v336 = vpop.f32.mrf.mxu0
      %v337 = vadd.f32 0.0, %v336
      %v338 = vpop.f32.mrf.mxu0
      %v339 = vadd.f32 0.0, %v338
      %340 = vmatmul.bf16.gmra.mxu0 %v283
      %v341 = vpop.f32.mrf.mxu0
      %v342 = vadd.f32 0.0, %v341
      %v343 = vpop.f32.mrf.mxu0
      %v344 = vadd.f32 0.0, %v343
      %345 = vmatmul.bf16.gmra.mxu0 %v286
      %v346 = vpop.f32.mrf.mxu0
      %v347 = vadd.f32 0.0, %v346
      %v348 = vpop.f32.mrf.mxu0
      %v349 = vadd.f32 0.0, %v348
      %350 = vmatmul.bf16.gmra.mxu0 %v289
      %v351 = vpop.f32.mrf.mxu0
      %v352 = vadd.f32 0.0, %v351
      %v353 = vpop.f32.mrf.mxu0
      %v354 = vadd.f32 0.0, %v353
      %355 = vmatmul.bf16.gmra.mxu0 %v292
      %v356 = vpop.f32.mrf.mxu0
      %v357 = vadd.f32 0.0, %v356
      %v358 = vpop.f32.mrf.mxu0
      %v359 = vadd.f32 0.0, %v358
      %360 = vmatmul.bf16.gmra.mxu0 %v295
      %v361 = vpop.f32.mrf.mxu0
      %v362 = vadd.f32 0.0, %v361
      %v363 = vpop.f32.mrf.mxu0
      %v364 = vadd.f32 0.0, %v363
      %365 = vmatmul.bf16.gmra.mxu0 %v298
      %v366 = vpop.f32.mrf.mxu0
      %v367 = vadd.f32 0.0, %v366
      %v368 = vpop.f32.mrf.mxu0
      %v369 = vadd.f32 0.0, %v368
      %370 = vmatmul.bf16.gmra.mxu0 %v301
      %v371 = vpop.f32.mrf.mxu0
      %v372 = vadd.f32 0.0, %v371
      %v373 = vpop.f32.mrf.mxu0
      %v374 = vadd.f32 0.0, %v373
      %375 = vmatmul.bf16.gmra.mxu0 %v304
      %v376 = vpop.f32.mrf.mxu0
      %v377 = vadd.f32 0.0, %v376
      %v378 = vpop.f32.mrf.mxu0
      %v379 = vadd.f32 0.0, %v378
      %380 = vmatmul.bf16.gmra.mxu0 %v307
      %v381 = vpop.f32.mrf.mxu0
      %v382 = vadd.f32 0.0, %v381
      %v383 = vpop.f32.mrf.mxu0
      %v384 = vadd.f32 0.0, %v383
      %385 = vmatmul.bf16.gmra.mxu0 %v310
      %v386 = vpop.f32.mrf.mxu0
      %v387 = vadd.f32 0.0, %v386
      %v388 = vpop.f32.mrf.mxu0
      %v389 = vadd.f32 0.0, %v388
      %390 = vmatmul.bf16.gmra.mxu0 %v313
      %v391 = vpop.f32.mrf.mxu0
      %v392 = vadd.f32 0.0, %v391
      %v393 = vpop.f32.mrf.mxu0
      %394 = vdwg.mxu0
      %s395 = scalar_lea.vmem %s165, 100
      %v396 = vld [vmem:[%s395] sm:$0xf]
      %v397 = vld [vmem:[%s395 + $0x4] sm:$0xf]
      %v398 = vld [vmem:[%s395 + $0x8] sm:$0xf]
      %v399 = vld [vmem:[%s395 + $0xc] sm:$0xf]
      %v400 = vld [vmem:[%s395 + $0x10] sm:$0xf]
      %v401 = vld [vmem:[%s395 + $0x14] sm:$0xf]
      %v402 = vld [vmem:[%s395 + $0x18] sm:$0xf]
      %v403 = vld [vmem:[%s395 + $0x1c] sm:$0xf]
      %v404 = vld [vmem:[%s395 + $0x20] sm:$0xf]
      %v405 = vld [vmem:[%s395 + $0x24] sm:$0xf]
      %v406 = vld [vmem:[%s395 + $0x28] sm:$0xf]
      %v407 = vld [vmem:[%s395 + $0x2c] sm:$0xf]
      %v408 = vld [vmem:[%s395 + $0x30] sm:$0xf]
      %v409 = vld [vmem:[%s395 + $0x34] sm:$0xf]
      %v410 = vld [vmem:[%s395 + $0x38] sm:$0xf]
      %v411 = vld [vmem:[%s395 + $0x3c] sm:$0xf]
      %v412 = vld [vmem:[%s395 + $0x40] sm:$0xf]
      %v413 = vld [vmem:[%s395 + $0x44] sm:$0xf]
      %v414 = vld [vmem:[%s395 + $0x48] sm:$0xf]
      %v415 = vld [vmem:[%s395 + $0x4c] sm:$0xf]
      %v416 = vld [vmem:[%s395 + $0x50] sm:$0xf]
      %v417 = vld [vmem:[%s395 + $0x54] sm:$0xf]
      %v418 = vld [vmem:[%s395 + $0x58] sm:$0xf]
      %v419 = vld [vmem:[%s395 + $0x5c] sm:$0xf]
      %v420 = vld [vmem:[%s395 + $0x60] sm:$0x3]
      %v446 = vunpack.c.l.b16 %v396
      %v447 = vunpack.c.l.b16 %v397
      %v448 = vunpack.c.l.b16 %v398
      %v449 = vunpack.c.l.b16 %v399
      %v450 = vunpack.c.l.b16 %v400
      %v451 = vunpack.c.l.b16 %v401
      %v452 = vunpack.c.l.b16 %v402
      %v453 = vunpack.c.l.b16 %v403
      %v454 = vunpack.c.l.b16 %v404
      %v455 = vunpack.c.l.b16 %v405
      %v456 = vunpack.c.l.b16 %v406
      %v457 = vunpack.c.l.b16 %v407
      %v458 = vunpack.c.l.b16 %v408
      %v459 = vunpack.c.l.b16 %v409
      %v460 = vunpack.c.l.b16 %v410
      %v461 = vunpack.c.l.b16 %v411
      %v462 = vunpack.c.l.b16 %v412
      %v463 = vunpack.c.l.b16 %v413
      %v464 = vunpack.c.l.b16 %v414
      %v465 = vunpack.c.l.b16 %v415
      %v466 = vunpack.c.l.b16 %v416
      %v467 = vunpack.c.l.b16 %v417
      %v468 = vunpack.c.l.b16 %v418
      %v469 = vunpack.c.l.b16 %v419
      %v470 = vunpack.c.l.b16 %v420
      %v471 = vpack.c.b16 %v447, %v446
      %v472 = vpack.c.b16 %v449, %v448
      %v473 = vpack.c.b16 %v451, %v450
      %v474 = vpack.c.b16 %v453, %v452
      %v475 = vpack.c.b16 %v455, %v454
      %v476 = vpack.c.b16 %v457, %v456
      %v477 = vpack.c.b16 %v459, %v458
      %v478 = vpack.c.b16 %v461, %v460
      %v479 = vpack.c.b16 %v463, %v462
      %v480 = vpack.c.b16 %v465, %v464
      %v481 = vpack.c.b16 %v467, %v466
      %v482 = vpack.c.b16 %v469, %v468
      %v483 = vpack.c.b16 %v470, %v470
      %v485 = vsel %vm275, %v471, 0
      %v488 = vsel %vm275, %v472, 0
      %v491 = vsel %vm275, %v473, 0
      %v494 = vsel %vm275, %v474, 0
      %v497 = vsel %vm275, %v475, 0
      %v500 = vsel %vm275, %v476, 0
      %v503 = vsel %vm275, %v477, 0
      %v506 = vsel %vm275, %v478, 0
      %v509 = vsel %vm275, %v479, 0
      %v512 = vsel %vm275, %v480, 0
      %v515 = vsel %vm275, %v481, 0
      %v518 = vsel %vm275, %v482, 0
      %v521 = vsel %vm275, %v483, 0
      %523 = vmatpush.bf16.msra.mxu0 0
      %524 = vmatpush.bf16.msra.mxu0 0
      %525 = vmatpush.bf16.msra.mxu0 0
      %526 = vmatpush.bf16.msra.mxu0 0
      %527 = vmatpush.bf16.msra.mxu0 0
      %528 = vmatpush.bf16.msra.mxu0 0
      %529 = vmatpush.bf16.msra.mxu0 %v320
      %530 = vmatpush.bf16.msra.mxu0 %v272
      %531 = vmatmul.bf16.gmra.mxu0 %v485
      %v532 = vpop.f32.mrf.mxu0
      %v533 = vadd.f32 0.0, %v532
      %v534 = vpop.f32.mrf.mxu0
      %v535 = vadd.f32 0.0, %v534
      %536 = vmatmul.bf16.gmra.mxu0 %v488
      %v537 = vpop.f32.mrf.mxu0
      %v538 = vadd.f32 0.0, %v537
      %v539 = vpop.f32.mrf.mxu0
      %v540 = vadd.f32 0.0, %v539
      %541 = vmatmul.bf16.gmra.mxu0 %v491
      %v542 = vpop.f32.mrf.mxu0
      %v543 = vadd.f32 0.0, %v542
      %v544 = vpop.f32.mrf.mxu0
      %v545 = vadd.f32 0.0, %v544
      %546 = vmatmul.bf16.gmra.mxu0 %v494
      %v547 = vpop.f32.mrf.mxu0
      %v548 = vadd.f32 0.0, %v547
      %v549 = vpop.f32.mrf.mxu0
      %v550 = vadd.f32 0.0, %v549
      %551 = vmatmul.bf16.gmra.mxu0 %v497
      %v552 = vpop.f32.mrf.mxu0
      %v553 = vadd.f32 0.0, %v552
      %v554 = vpop.f32.mrf.mxu0
      %v555 = vadd.f32 0.0, %v554
      %556 = vmatmul.bf16.gmra.mxu0 %v500
      %v557 = vpop.f32.mrf.mxu0
      %v558 = vadd.f32 0.0, %v557
      %v559 = vpop.f32.mrf.mxu0
      %v560 = vadd.f32 0.0, %v559
      %561 = vmatmul.bf16.gmra.mxu0 %v503
      %v562 = vpop.f32.mrf.mxu0
      %v563 = vadd.f32 0.0, %v562
      %v564 = vpop.f32.mrf.mxu0
      %v565 = vadd.f32 0.0, %v564
      %566 = vmatmul.bf16.gmra.mxu0 %v506
      %v567 = vpop.f32.mrf.mxu0
      %v568 = vadd.f32 0.0, %v567
      %v569 = vpop.f32.mrf.mxu0
      %v570 = vadd.f32 0.0, %v569
      %571 = vmatmul.bf16.gmra.mxu0 %v509
      %v572 = vpop.f32.mrf.mxu0
      %v573 = vadd.f32 0.0, %v572
      %v574 = vpop.f32.mrf.mxu0
      %v575 = vadd.f32 0.0, %v574
      %576 = vmatmul.bf16.gmra.mxu0 %v512
      %v577 = vpop.f32.mrf.mxu0
      %v578 = vadd.f32 0.0, %v577
      %v579 = vpop.f32.mrf.mxu0
      %v580 = vadd.f32 0.0, %v579
      %581 = vmatmul.bf16.gmra.mxu0 %v515
      %v582 = vpop.f32.mrf.mxu0
      %v583 = vadd.f32 0.0, %v582
      %v584 = vpop.f32.mrf.mxu0
      %v585 = vadd.f32 0.0, %v584
      %586 = vmatmul.bf16.gmra.mxu0 %v518
      %v587 = vpop.f32.mrf.mxu0
      %v588 = vadd.f32 0.0, %v587
      %v589 = vpop.f32.mrf.mxu0
      %v590 = vadd.f32 0.0, %v589
      %591 = vmatmul.bf16.gmra.mxu0 %v521
      %v592 = vpop.f32.mrf.mxu0
      %v593 = vadd.f32 0.0, %v592
      %v594 = vpop.f32.mrf.mxu0
      %595 = vdwg.mxu0
      %v596 = vmax.f32 %v332, %v533
      %v597 = vmax.f32 %v334, %v535
      %v598 = vmax.f32 %v337, %v538
      %v599 = vmax.f32 %v339, %v540
      %v600 = vmax.f32 %v342, %v543
      %v601 = vmax.f32 %v344, %v545
      %v602 = vmax.f32 %v347, %v548
      %v603 = vmax.f32 %v349, %v550
      %v604 = vmax.f32 %v352, %v553
      %v605 = vmax.f32 %v354, %v555
      %v606 = vmax.f32 %v357, %v558
      %v607 = vmax.f32 %v359, %v560
      %v608 = vmax.f32 %v362, %v563
      %v609 = vmax.f32 %v364, %v565
      %v610 = vmax.f32 %v367, %v568
      %v611 = vmax.f32 %v369, %v570
      %v612 = vmax.f32 %v372, %v573
      %v613 = vmax.f32 %v374, %v575
      %v614 = vmax.f32 %v377, %v578
      %v615 = vmax.f32 %v379, %v580
      %v616 = vmax.f32 %v382, %v583
      %v617 = vmax.f32 %v384, %v585
      %v618 = vmax.f32 %v387, %v588
      %v619 = vmax.f32 %v389, %v590
      %v620 = vmax.f32 %v392, %v593
      %s621 = scalar_lea.vmem %s165, 200
      %v622 = vld [vmem:[%s621] sm:$0xf]
      %v623 = vld [vmem:[%s621 + $0x4] sm:$0xf]
      %v624 = vld [vmem:[%s621 + $0x8] sm:$0xf]
      %v625 = vld [vmem:[%s621 + $0xc] sm:$0xf]
      %v626 = vld [vmem:[%s621 + $0x10] sm:$0xf]
      %v627 = vld [vmem:[%s621 + $0x14] sm:$0xf]
      %v628 = vld [vmem:[%s621 + $0x18] sm:$0xf]
      %v629 = vld [vmem:[%s621 + $0x1c] sm:$0xf]
      %v630 = vld [vmem:[%s621 + $0x20] sm:$0xf]
      %v631 = vld [vmem:[%s621 + $0x24] sm:$0xf]
      %v632 = vld [vmem:[%s621 + $0x28] sm:$0xf]
      %v633 = vld [vmem:[%s621 + $0x2c] sm:$0xf]
      %v634 = vld [vmem:[%s621 + $0x30] sm:$0xf]
      %v635 = vld [vmem:[%s621 + $0x34] sm:$0xf]
      %v636 = vld [vmem:[%s621 + $0x38] sm:$0xf]
      %v637 = vld [vmem:[%s621 + $0x3c] sm:$0xf]
      %v638 = vld [vmem:[%s621 + $0x40] sm:$0xf]
      %v639 = vld [vmem:[%s621 + $0x44] sm:$0xf]
      %v640 = vld [vmem:[%s621 + $0x48] sm:$0xf]
      %v641 = vld [vmem:[%s621 + $0x4c] sm:$0xf]
      %v642 = vld [vmem:[%s621 + $0x50] sm:$0xf]
      %v643 = vld [vmem:[%s621 + $0x54] sm:$0xf]
      %v644 = vld [vmem:[%s621 + $0x58] sm:$0xf]
      %v645 = vld [vmem:[%s621 + $0x5c] sm:$0xf]
      %v646 = vld [vmem:[%s621 + $0x60] sm:$0x3]
      %v672 = vunpack.c.l.b16 %v622
      %v673 = vunpack.c.l.b16 %v623
      %v674 = vunpack.c.l.b16 %v624
      %v675 = vunpack.c.l.b16 %v625
      %v676 = vunpack.c.l.b16 %v626
      %v677 = vunpack.c.l.b16 %v627
      %v678 = vunpack.c.l.b16 %v628
      %v679 = vunpack.c.l.b16 %v629
      %v680 = vunpack.c.l.b16 %v630
      %v681 = vunpack.c.l.b16 %v631
      %v682 = vunpack.c.l.b16 %v632
      %v683 = vunpack.c.l.b16 %v633
      %v684 = vunpack.c.l.b16 %v634
      %v685 = vunpack.c.l.b16 %v635
      %v686 = vunpack.c.l.b16 %v636
      %v687 = vunpack.c.l.b16 %v637
      %v688 = vunpack.c.l.b16 %v638
      %v689 = vunpack.c.l.b16 %v639
      %v690 = vunpack.c.l.b16 %v640
      %v691 = vunpack.c.l.b16 %v641
      %v692 = vunpack.c.l.b16 %v642
      %v693 = vunpack.c.l.b16 %v643
      %v694 = vunpack.c.l.b16 %v644
      %v695 = vunpack.c.l.b16 %v645
      %v696 = vunpack.c.l.b16 %v646
      %v697 = vpack.c.b16 %v673, %v672
      %v698 = vpack.c.b16 %v675, %v674
      %v699 = vpack.c.b16 %v677, %v676
      %v700 = vpack.c.b16 %v679, %v678
      %v701 = vpack.c.b16 %v681, %v680
      %v702 = vpack.c.b16 %v683, %v682
      %v703 = vpack.c.b16 %v685, %v684
      %v704 = vpack.c.b16 %v687, %v686
      %v705 = vpack.c.b16 %v689, %v688
      %v706 = vpack.c.b16 %v691, %v690
      %v707 = vpack.c.b16 %v693, %v692
      %v708 = vpack.c.b16 %v695, %v694
      %v709 = vpack.c.b16 %v696, %v696
      %v711 = vsel %vm275, %v697, 0
      %v714 = vsel %vm275, %v698, 0
      %v717 = vsel %vm275, %v699, 0
      %v720 = vsel %vm275, %v700, 0
      %v723 = vsel %vm275, %v701, 0
      %v726 = vsel %vm275, %v702, 0
      %v729 = vsel %vm275, %v703, 0
      %v732 = vsel %vm275, %v704, 0
      %v735 = vsel %vm275, %v705, 0
      %v738 = vsel %vm275, %v706, 0
      %v741 = vsel %vm275, %v707, 0
      %v744 = vsel %vm275, %v708, 0
      %v747 = vsel %vm275, %v709, 0
      %749 = vmatpush.bf16.msra.mxu0 0
      %750 = vmatpush.bf16.msra.mxu0 0
      %751 = vmatpush.bf16.msra.mxu0 0
      %752 = vmatpush.bf16.msra.mxu0 0
      %753 = vmatpush.bf16.msra.mxu0 0
      %754 = vmatpush.bf16.msra.mxu0 0
      %755 = vmatpush.bf16.msra.mxu0 %v320
      %756 = vmatpush.bf16.msra.mxu0 %v272
      %757 = vmatmul.bf16.gmra.mxu0 %v711
      %v758 = vpop.f32.mrf.mxu0
      %v759 = vadd.f32 0.0, %v758
      %v760 = vpop.f32.mrf.mxu0
      %v761 = vadd.f32 0.0, %v760
      %762 = vmatmul.bf16.gmra.mxu0 %v714
      %v763 = vpop.f32.mrf.mxu0
      %v764 = vadd.f32 0.0, %v763
      %v765 = vpop.f32.mrf.mxu0
      %v766 = vadd.f32 0.0, %v765
      %767 = vmatmul.bf16.gmra.mxu0 %v717
      %v768 = vpop.f32.mrf.mxu0
      %v769 = vadd.f32 0.0, %v768
      %v770 = vpop.f32.mrf.mxu0
      %v771 = vadd.f32 0.0, %v770
      %772 = vmatmul.bf16.gmra.mxu0 %v720
      %v773 = vpop.f32.mrf.mxu0
      %v774 = vadd.f32 0.0, %v773
      %v775 = vpop.f32.mrf.mxu0
      %v776 = vadd.f32 0.0, %v775
      %777 = vmatmul.bf16.gmra.mxu0 %v723
      %v778 = vpop.f32.mrf.mxu0
      %v779 = vadd.f32 0.0, %v778
      %v780 = vpop.f32.mrf.mxu0
      %v781 = vadd.f32 0.0, %v780
      %782 = vmatmul.bf16.gmra.mxu0 %v726
      %v783 = vpop.f32.mrf.mxu0
      %v784 = vadd.f32 0.0, %v783
      %v785 = vpop.f32.mrf.mxu0
      %v786 = vadd.f32 0.0, %v785
      %787 = vmatmul.bf16.gmra.mxu0 %v729
      %v788 = vpop.f32.mrf.mxu0
      %v789 = vadd.f32 0.0, %v788
      %v790 = vpop.f32.mrf.mxu0
      %v791 = vadd.f32 0.0, %v790
      %792 = vmatmul.bf16.gmra.mxu0 %v732
      %v793 = vpop.f32.mrf.mxu0
      %v794 = vadd.f32 0.0, %v793
      %v795 = vpop.f32.mrf.mxu0
      %v796 = vadd.f32 0.0, %v795
      %797 = vmatmul.bf16.gmra.mxu0 %v735
      %v798 = vpop.f32.mrf.mxu0
      %v799 = vadd.f32 0.0, %v798
      %v800 = vpop.f32.mrf.mxu0
      %v801 = vadd.f32 0.0, %v800
      %802 = vmatmul.bf16.gmra.mxu0 %v738
      %v803 = vpop.f32.mrf.mxu0
      %v804 = vadd.f32 0.0, %v803
      %v805 = vpop.f32.mrf.mxu0
      %v806 = vadd.f32 0.0, %v805
      %807 = vmatmul.bf16.gmra.mxu0 %v741
      %v808 = vpop.f32.mrf.mxu0
      %v809 = vadd.f32 0.0, %v808
      %v810 = vpop.f32.mrf.mxu0
      %v811 = vadd.f32 0.0, %v810
      %812 = vmatmul.bf16.gmra.mxu0 %v744
      %v813 = vpop.f32.mrf.mxu0
      %v814 = vadd.f32 0.0, %v813
      %v815 = vpop.f32.mrf.mxu0
      %v816 = vadd.f32 0.0, %v815
      %817 = vmatmul.bf16.gmra.mxu0 %v747
      %v818 = vpop.f32.mrf.mxu0
      %v819 = vadd.f32 0.0, %v818
      %v820 = vpop.f32.mrf.mxu0
      %821 = vdwg.mxu0
      %v822 = vmax.f32 %v596, %v759
      %v823 = vmax.f32 %v597, %v761
      %v824 = vmax.f32 %v598, %v764
      %v825 = vmax.f32 %v599, %v766
      %v826 = vmax.f32 %v600, %v769
      %v827 = vmax.f32 %v601, %v771
      %v828 = vmax.f32 %v602, %v774
      %v829 = vmax.f32 %v603, %v776
      %v830 = vmax.f32 %v604, %v779
      %v831 = vmax.f32 %v605, %v781
      %v832 = vmax.f32 %v606, %v784
      %v833 = vmax.f32 %v607, %v786
      %v834 = vmax.f32 %v608, %v789
      %v835 = vmax.f32 %v609, %v791
      %v836 = vmax.f32 %v610, %v794
      %v837 = vmax.f32 %v611, %v796
      %v838 = vmax.f32 %v612, %v799
      %v839 = vmax.f32 %v613, %v801
      %v840 = vmax.f32 %v614, %v804
      %v841 = vmax.f32 %v615, %v806
      %v842 = vmax.f32 %v616, %v809
      %v843 = vmax.f32 %v617, %v811
      %v844 = vmax.f32 %v618, %v814
      %v845 = vmax.f32 %v619, %v816
      %v846 = vmax.f32 %v620, %v819
      %s847 = scalar_lea.vmem %s165, 300
      %v848 = vld [vmem:[%s847] sm:$0xf]
      %v849 = vld [vmem:[%s847 + $0x4] sm:$0xf]
      %v850 = vld [vmem:[%s847 + $0x8] sm:$0xf]
      %v851 = vld [vmem:[%s847 + $0xc] sm:$0xf]
      %v852 = vld [vmem:[%s847 + $0x10] sm:$0xf]
      %v853 = vld [vmem:[%s847 + $0x14] sm:$0xf]
      %v854 = vld [vmem:[%s847 + $0x18] sm:$0xf]
      %v855 = vld [vmem:[%s847 + $0x1c] sm:$0xf]
      %v856 = vld [vmem:[%s847 + $0x20] sm:$0xf]
      %v857 = vld [vmem:[%s847 + $0x24] sm:$0xf]
      %v858 = vld [vmem:[%s847 + $0x28] sm:$0xf]
      %v859 = vld [vmem:[%s847 + $0x2c] sm:$0xf]
      %v860 = vld [vmem:[%s847 + $0x30] sm:$0xf]
      %v861 = vld [vmem:[%s847 + $0x34] sm:$0xf]
      %v862 = vld [vmem:[%s847 + $0x38] sm:$0xf]
      %v863 = vld [vmem:[%s847 + $0x3c] sm:$0xf]
      %v864 = vld [vmem:[%s847 + $0x40] sm:$0xf]
      %v865 = vld [vmem:[%s847 + $0x44] sm:$0xf]
      %v866 = vld [vmem:[%s847 + $0x48] sm:$0xf]
      %v867 = vld [vmem:[%s847 + $0x4c] sm:$0xf]
      %v868 = vld [vmem:[%s847 + $0x50] sm:$0xf]
      %v869 = vld [vmem:[%s847 + $0x54] sm:$0xf]
      %v870 = vld [vmem:[%s847 + $0x58] sm:$0xf]
      %v871 = vld [vmem:[%s847 + $0x5c] sm:$0xf]
      %v872 = vld [vmem:[%s847 + $0x60] sm:$0x3]
      %v898 = vunpack.c.l.b16 %v848
      %v899 = vunpack.c.l.b16 %v849
      %v900 = vunpack.c.l.b16 %v850
      %v901 = vunpack.c.l.b16 %v851
      %v902 = vunpack.c.l.b16 %v852
      %v903 = vunpack.c.l.b16 %v853
      %v904 = vunpack.c.l.b16 %v854
      %v905 = vunpack.c.l.b16 %v855
      %v906 = vunpack.c.l.b16 %v856
      %v907 = vunpack.c.l.b16 %v857
      %v908 = vunpack.c.l.b16 %v858
      %v909 = vunpack.c.l.b16 %v859
      %v910 = vunpack.c.l.b16 %v860
      %v911 = vunpack.c.l.b16 %v861
      %v912 = vunpack.c.l.b16 %v862
      %v913 = vunpack.c.l.b16 %v863
      %v914 = vunpack.c.l.b16 %v864
      %v915 = vunpack.c.l.b16 %v865
      %v916 = vunpack.c.l.b16 %v866
      %v917 = vunpack.c.l.b16 %v867
      %v918 = vunpack.c.l.b16 %v868
      %v919 = vunpack.c.l.b16 %v869
      %v920 = vunpack.c.l.b16 %v870
      %v921 = vunpack.c.l.b16 %v871
      %v922 = vunpack.c.l.b16 %v872
      %v923 = vpack.c.b16 %v899, %v898
      %v924 = vpack.c.b16 %v901, %v900
      %v925 = vpack.c.b16 %v903, %v902
      %v926 = vpack.c.b16 %v905, %v904
      %v927 = vpack.c.b16 %v907, %v906
      %v928 = vpack.c.b16 %v909, %v908
      %v929 = vpack.c.b16 %v911, %v910
      %v930 = vpack.c.b16 %v913, %v912
      %v931 = vpack.c.b16 %v915, %v914
      %v932 = vpack.c.b16 %v917, %v916
      %v933 = vpack.c.b16 %v919, %v918
      %v934 = vpack.c.b16 %v921, %v920
      %v935 = vpack.c.b16 %v922, %v922
      %v937 = vsel %vm275, %v923, 0
      %v940 = vsel %vm275, %v924, 0
      %v943 = vsel %vm275, %v925, 0
      %v946 = vsel %vm275, %v926, 0
      %v949 = vsel %vm275, %v927, 0
      %v952 = vsel %vm275, %v928, 0
      %v955 = vsel %vm275, %v929, 0
      %v958 = vsel %vm275, %v930, 0
      %v961 = vsel %vm275, %v931, 0
      %v964 = vsel %vm275, %v932, 0
      %v967 = vsel %vm275, %v933, 0
      %v970 = vsel %vm275, %v934, 0
      %v973 = vsel %vm275, %v935, 0
      %975 = vmatpush.bf16.msra.mxu0 0
      %976 = vmatpush.bf16.msra.mxu0 0
      %977 = vmatpush.bf16.msra.mxu0 0
      %978 = vmatpush.bf16.msra.mxu0 0
      %979 = vmatpush.bf16.msra.mxu0 0
      %980 = vmatpush.bf16.msra.mxu0 0
      %981 = vmatpush.bf16.msra.mxu0 %v320
      %982 = vmatpush.bf16.msra.mxu0 %v272
      %983 = vmatmul.bf16.gmra.mxu0 %v937
      %v984 = vpop.f32.mrf.mxu0
      %v985 = vadd.f32 0.0, %v984
      %v986 = vpop.f32.mrf.mxu0
      %v987 = vadd.f32 0.0, %v986
      %988 = vmatmul.bf16.gmra.mxu0 %v940
      %v989 = vpop.f32.mrf.mxu0
      %v990 = vadd.f32 0.0, %v989
      %v991 = vpop.f32.mrf.mxu0
      %v992 = vadd.f32 0.0, %v991
      %993 = vmatmul.bf16.gmra.mxu0 %v943
      %v994 = vpop.f32.mrf.mxu0
      %v995 = vadd.f32 0.0, %v994
      %v996 = vpop.f32.mrf.mxu0
      %v997 = vadd.f32 0.0, %v996
      %998 = vmatmul.bf16.gmra.mxu0 %v946
      %v999 = vpop.f32.mrf.mxu0
      %v1000 = vadd.f32 0.0, %v999
      %v1001 = vpop.f32.mrf.mxu0
      %v1002 = vadd.f32 0.0, %v1001
      %1003 = vmatmul.bf16.gmra.mxu0 %v949
      %v1004 = vpop.f32.mrf.mxu0
      %v1005 = vadd.f32 0.0, %v1004
      %v1006 = vpop.f32.mrf.mxu0
      %v1007 = vadd.f32 0.0, %v1006
      %1008 = vmatmul.bf16.gmra.mxu0 %v952
      %v1009 = vpop.f32.mrf.mxu0
      %v1010 = vadd.f32 0.0, %v1009
      %v1011 = vpop.f32.mrf.mxu0
      %v1012 = vadd.f32 0.0, %v1011
      %1013 = vmatmul.bf16.gmra.mxu0 %v955
      %v1014 = vpop.f32.mrf.mxu0
      %v1015 = vadd.f32 0.0, %v1014
      %v1016 = vpop.f32.mrf.mxu0
      %v1017 = vadd.f32 0.0, %v1016
      %1018 = vmatmul.bf16.gmra.mxu0 %v958
      %v1019 = vpop.f32.mrf.mxu0
      %v1020 = vadd.f32 0.0, %v1019
      %v1021 = vpop.f32.mrf.mxu0
      %v1022 = vadd.f32 0.0, %v1021
      %1023 = vmatmul.bf16.gmra.mxu0 %v961
      %v1024 = vpop.f32.mrf.mxu0
      %v1025 = vadd.f32 0.0, %v1024
      %v1026 = vpop.f32.mrf.mxu0
      %v1027 = vadd.f32 0.0, %v1026
      %1028 = vmatmul.bf16.gmra.mxu0 %v964
      %v1029 = vpop.f32.mrf.mxu0
      %v1030 = vadd.f32 0.0, %v1029
      %v1031 = vpop.f32.mrf.mxu0
      %v1032 = vadd.f32 0.0, %v1031
      %1033 = vmatmul.bf16.gmra.mxu0 %v967
      %v1034 = vpop.f32.mrf.mxu0
      %v1035 = vadd.f32 0.0, %v1034
      %v1036 = vpop.f32.mrf.mxu0
      %v1037 = vadd.f32 0.0, %v1036
      %1038 = vmatmul.bf16.gmra.mxu0 %v970
      %v1039 = vpop.f32.mrf.mxu0
      %v1040 = vadd.f32 0.0, %v1039
      %v1041 = vpop.f32.mrf.mxu0
      %v1042 = vadd.f32 0.0, %v1041
      %1043 = vmatmul.bf16.gmra.mxu0 %v973
      %v1044 = vpop.f32.mrf.mxu0
      %v1045 = vadd.f32 0.0, %v1044
      %v1046 = vpop.f32.mrf.mxu0
      %1047 = vdwg.mxu0
      %v1048 = vmax.f32 %v822, %v985
      %v1049 = vmax.f32 %v823, %v987
      %v1050 = vmax.f32 %v824, %v990
      %v1051 = vmax.f32 %v825, %v992
      %v1052 = vmax.f32 %v826, %v995
      %v1053 = vmax.f32 %v827, %v997
      %v1054 = vmax.f32 %v828, %v1000
      %v1055 = vmax.f32 %v829, %v1002
      %v1056 = vmax.f32 %v830, %v1005
      %v1057 = vmax.f32 %v831, %v1007
      %v1058 = vmax.f32 %v832, %v1010
      %v1059 = vmax.f32 %v833, %v1012
      %v1060 = vmax.f32 %v834, %v1015
      %v1061 = vmax.f32 %v835, %v1017
      %v1062 = vmax.f32 %v836, %v1020
      %v1063 = vmax.f32 %v837, %v1022
      %v1064 = vmax.f32 %v838, %v1025
      %v1065 = vmax.f32 %v839, %v1027
      %v1066 = vmax.f32 %v840, %v1030
      %v1067 = vmax.f32 %v841, %v1032
      %v1068 = vmax.f32 %v842, %v1035
      %v1069 = vmax.f32 %v843, %v1037
      %v1070 = vmax.f32 %v844, %v1040
      %v1071 = vmax.f32 %v845, %v1042
      %v1072 = vmax.f32 %v846, %v1045
      %v1073 = vld [vmem:[%s2] sm:$0x1]
      %v1075 = vperm.slane %v1073, 0
      %v1077 = vadd.f32 %v1048, %v1075
      %v1078 = vadd.f32 %v1049, %v1075
      %v1079 = vadd.f32 %v1050, %v1075
      %v1080 = vadd.f32 %v1051, %v1075
      %v1081 = vadd.f32 %v1052, %v1075
      %v1082 = vadd.f32 %v1053, %v1075
      %v1083 = vadd.f32 %v1054, %v1075
      %v1084 = vadd.f32 %v1055, %v1075
      %v1085 = vadd.f32 %v1056, %v1075
      %v1086 = vadd.f32 %v1057, %v1075
      %v1087 = vadd.f32 %v1058, %v1075
      %v1088 = vadd.f32 %v1059, %v1075
      %v1089 = vadd.f32 %v1060, %v1075
      %v1090 = vadd.f32 %v1061, %v1075
      %v1091 = vadd.f32 %v1062, %v1075
      %v1092 = vadd.f32 %v1063, %v1075
      %v1093 = vadd.f32 %v1064, %v1075
      %v1094 = vadd.f32 %v1065, %v1075
      %v1095 = vadd.f32 %v1066, %v1075
      %v1096 = vadd.f32 %v1067, %v1075
      %v1097 = vadd.f32 %v1068, %v1075
      %v1098 = vadd.f32 %v1069, %v1075
      %v1099 = vadd.f32 %v1070, %v1075
      %v1100 = vadd.f32 %v1071, %v1075
      %v1101 = vadd.f32 %v1072, %v1075
      %v1102 = vmax.f32 %v1077, 0.0
      %v1103 = vmax.f32 %v1078, 0.0
      %v1104 = vmax.f32 %v1079, 0.0
      %v1105 = vmax.f32 %v1080, 0.0
      %v1106 = vmax.f32 %v1081, 0.0
      %v1107 = vmax.f32 %v1082, 0.0
      %v1108 = vmax.f32 %v1083, 0.0
      %v1109 = vmax.f32 %v1084, 0.0
      %v1110 = vmax.f32 %v1085, 0.0
      %v1111 = vmax.f32 %v1086, 0.0
      %v1112 = vmax.f32 %v1087, 0.0
      %v1113 = vmax.f32 %v1088, 0.0
      %v1114 = vmax.f32 %v1089, 0.0
      %v1115 = vmax.f32 %v1090, 0.0
      %v1116 = vmax.f32 %v1091, 0.0
      %v1117 = vmax.f32 %v1092, 0.0
      %v1118 = vmax.f32 %v1093, 0.0
      %v1119 = vmax.f32 %v1094, 0.0
      %v1120 = vmax.f32 %v1095, 0.0
      %v1121 = vmax.f32 %v1096, 0.0
      %v1122 = vmax.f32 %v1097, 0.0
      %v1123 = vmax.f32 %v1098, 0.0
      %v1124 = vmax.f32 %v1099, 0.0
      %v1125 = vmax.f32 %v1100, 0.0
      %v1126 = vmax.f32 %v1101, 0.0
      %v1127 = vpack.c.bf16 %v1102, %v1102
      %v1128 = vpack.c.bf16 %v1103, %v1103
      %v1129 = vpack.c.bf16 %v1104, %v1104
      %v1130 = vpack.c.bf16 %v1105, %v1105
      %v1131 = vpack.c.bf16 %v1106, %v1106
      %v1132 = vpack.c.bf16 %v1107, %v1107
      %v1133 = vpack.c.bf16 %v1108, %v1108
      %v1134 = vpack.c.bf16 %v1109, %v1109
      %v1135 = vpack.c.bf16 %v1110, %v1110
      %v1136 = vpack.c.bf16 %v1111, %v1111
      %v1137 = vpack.c.bf16 %v1112, %v1112
      %v1138 = vpack.c.bf16 %v1113, %v1113
      %v1139 = vpack.c.bf16 %v1114, %v1114
      %v1140 = vpack.c.bf16 %v1115, %v1115
      %v1141 = vpack.c.bf16 %v1116, %v1116
      %v1142 = vpack.c.bf16 %v1117, %v1117
      %v1143 = vpack.c.bf16 %v1118, %v1118
      %v1144 = vpack.c.bf16 %v1119, %v1119
      %v1145 = vpack.c.bf16 %v1120, %v1120
      %v1146 = vpack.c.bf16 %v1121, %v1121
      %v1147 = vpack.c.bf16 %v1122, %v1122
      %v1148 = vpack.c.bf16 %v1123, %v1123
      %v1149 = vpack.c.bf16 %v1124, %v1124
      %v1150 = vpack.c.bf16 %v1125, %v1125
      %v1151 = vpack.c.bf16 %v1126, %v1126
      %vm1152 = vcmask 125952
      %1153 = vst.msk [vmem:[%s170] sm:$0xf] %vm1152, %v1127
      %1154 = vst.msk [vmem:[%s170 + $0x4] sm:$0xf] %vm1152, %v1128
      %1155 = vst.msk [vmem:[%s170 + $0x8] sm:$0xf] %vm1152, %v1129
      %1156 = vst.msk [vmem:[%s170 + $0xc] sm:$0xf] %vm1152, %v1130
      %1157 = vst.msk [vmem:[%s170 + $0x10] sm:$0xf] %vm1152, %v1131
      %1158 = vst.msk [vmem:[%s170 + $0x14] sm:$0xf] %vm1152, %v1132
      %1159 = vst.msk [vmem:[%s170 + $0x18] sm:$0xf] %vm1152, %v1133
      %1160 = vst.msk [vmem:[%s170 + $0x1c] sm:$0xf] %vm1152, %v1134
      %1161 = vst.msk [vmem:[%s170 + $0x20] sm:$0xf] %vm1152, %v1135
      %1162 = vst.msk [vmem:[%s170 + $0x24] sm:$0xf] %vm1152, %v1136
      %1163 = vst.msk [vmem:[%s170 + $0x28] sm:$0xf] %vm1152, %v1137
      %1164 = vst.msk [vmem:[%s170 + $0x2c] sm:$0xf] %vm1152, %v1138
      %1165 = vst.msk [vmem:[%s170 + $0x30] sm:$0xf] %vm1152, %v1139
      %1166 = vst.msk [vmem:[%s170 + $0x34] sm:$0xf] %vm1152, %v1140
      %1167 = vst.msk [vmem:[%s170 + $0x38] sm:$0xf] %vm1152, %v1141
      %1168 = vst.msk [vmem:[%s170 + $0x3c] sm:$0xf] %vm1152, %v1142
      %1169 = vst.msk [vmem:[%s170 + $0x40] sm:$0xf] %vm1152, %v1143
      %1170 = vst.msk [vmem:[%s170 + $0x44] sm:$0xf] %vm1152, %v1144
      %1171 = vst.msk [vmem:[%s170 + $0x48] sm:$0xf] %vm1152, %v1145
      %1172 = vst.msk [vmem:[%s170 + $0x4c] sm:$0xf] %vm1152, %v1146
      %1173 = vst.msk [vmem:[%s170 + $0x50] sm:$0xf] %vm1152, %v1147
      %1174 = vst.msk [vmem:[%s170 + $0x54] sm:$0xf] %vm1152, %v1148
      %1175 = vst.msk [vmem:[%s170 + $0x58] sm:$0xf] %vm1152, %v1149
      %1176 = vst.msk [vmem:[%s170 + $0x5c] sm:$0xf] %vm1152, %v1150
      %vm1177 = vcmask 123904
      %1178 = vst.msk [vmem:[%s170 + $0x60] sm:$0x3] %vm1177, %v1151
      %p1179 = scmp.lt.s32.totalorder %s14, 1
      %s1180 = scalar_select %p1179, %s14, 1
      %s1181 = smul.addr %s1180, 25
      %s1182 = smul.addr %s1181, 4
      %s1183 = scalar_lea.vmem %s3, %s1182
      // Predicated region
      $region33: #{vgg_forward.3} parent=31 // pred_check
        %p1184 = pneg %p100
      $region34: #{vgg_forward.3} parent=31 // pred_check_branch
        %1186 = sbr.rel (%p1184) target = $region36
      $region35: #{vgg_forward.3} parent=31 // pred_region
        _
      $region36: #{vgg_forward.3} parent=31 // pred_fallthru
        _
    $region32: #{vgg_forward.3} parent=5 // pred_fallthru
      _
    %p1187 = scmp.le.s32.totalorder 2, %s9
    // Predicated region
    $region37: #{vgg_forward.3} parent=5 // pred_check
      %p1188 = pneg %p1187
    $region38: #{vgg_forward.3} parent=5 // pred_check_branch
      %1190 = sbr.rel (%p1188) target = $region40
    $region39: #{vgg_forward.3} parent=5 // pred_region
      %s1191 = ssub.s32 %s9, 2
      // Predicated region
      $region41: #{vgg_forward.3} parent=39 // pred_check
        %p1192 = pneg %p106
      $region42: #{vgg_forward.3} parent=39 // pred_check_branch
        %1194 = sbr.rel (%p1192) target = $region44
      $region43: #{vgg_forward.3} parent=39 // pred_region
        %p1195 = scmp.lt.s32.totalorder %s15, 1
        %s1196 = scalar_select %p1195, %s15, 1
        %s1197 = smul.addr %s1196, 25
        %s1198 = smul.addr %s1197, 4
        %s1199 = scalar_lea.vmem %s3, %s1198
      $region44: #{vgg_forward.3} parent=39 // pred_fallthru
        _
    $region40: #{vgg_forward.3} parent=5 // pred_fallthru
      _
  $region6: #{vgg_forward.3} parent=0 // loop_footer
    %s13 = sadd.s32 1, %s9
  $region7: #{vgg_forward.3} parent=0 // loop_footer_branch
    %8 = sbr.rel target = $region3
  $region8: #{vgg_forward.3} parent=0 // loop_exit
    _

// kernel: vgg_forward.4
$region0: #{vgg_forward.4}
  #allocation0 [shape = 'u32[]', space=smem, size = 0x4, offset = 0x4, fixed_abs, tag = 'smem constant byte address 0x4 - core index']
  #allocation1 [shape = 'u32[72,128]{1,0:T(1,128)}', space=vmem, size = 0x9000, scoped, tag = 'internal scratch']
  %s0 = inlined_call_operand.vmem [shape: bf16[2,4,49,144], index: 0, kind: input, shape index: {}]
  %s1 = inlined_call_operand.vmem [shape: bf16[144,32], index: 1, kind: input, shape index: {}]
  %s2 = inlined_call_operand.vmem [shape: f32[1,32], index: 2, kind: input, shape index: {}]
  %s3 = inlined_call_operand.vmem [shape: bf16[2,49,32], index: 3, kind: output, shape index: {}]
  %s4 = sld [smem:[#allocation0]]
  $region45: #{vgg_forward.4} parent=0
    _
  %s6 = ssub.s32 1, %s4
  %s7 = scalar_select 0, %s6, %s4
  loop: start=0, step=1, limit=4
  $region2: #{vgg_forward.4} parent=0 // loop_pre_header
    _
  $region3: #{vgg_forward.4} parent=0 // loop_header
    %s9 = sphi 0, %s13
    %p10 = scmp.ge.s32.totalorder %s9, 4
    %s19 = sphi 0, %s21
    %s22 = sphi 0, %s19
    %s23 = sphi 0, %s22
    %s39 = sphi 0, %s23
    %s43 = sphi 0, %s43
    %s45 = sphi 0, %s43
    %s46 = sphi 0, %s45
    %s60 = sphi 0, %s46
    %s64 = sphi 0, %s64
    %s66 = sphi 0, %s64
    %s67 = sphi 0, %s66
    %s81 = sphi 0, %s67
    %s87 = sphi 0, %s89
    %s90 = sphi 0, %s87
    %s91 = sphi 0, %s90
    %s107 = sphi 0, %s91
  $region4: #{vgg_forward.4} parent=0 // loop_header_branch
    %12 = sbr.rel (%p10) target = $region8
  $region5: #{vgg_forward.4} parent=0 // loop_body
    %s14 = ssub.s32 %s9, 1
    %s15 = ssub.s32 %s9, 2
    %s16 = sadd.s32 %s9, 1
    %s17 = ssub.s32 %s9, %s16
    %p18 = scmp.eq.s32.totalorder %s17, 0
    %s20 = sadd.s32 %s19, 1
    %s21 = scalar_select %p18, %s19, %s20
    %p24 = pneg %p18
    %p25 = scmp.eq.s32.totalorder %s9, 1
    %p26 = por %p24, %p25
    %p27 = scmp.ne.s32.totalorder %s19, %s22
    %p28 = scmp.eq.s32.totalorder %s9, 0
    %p29 = por %p27, %p28
    %p30 = scmp.ne.s32.totalorder %s19, %s22
    %p31 = scmp.eq.s32.totalorder %s14, 1
    %p32 = por %p30, %p31
    %p33 = scmp.ne.s32.totalorder %s22, %s23
    %p34 = scmp.eq.s32.totalorder %s14, 0
    %p35 = por %p33, %p34
    %p36 = scmp.ne.s32.totalorder %s22, %s23
    %p37 = scmp.eq.s32.totalorder %s15, 1
    %p38 = por %p36, %p37
    %p40 = scmp.ne.s32.totalorder %s23, %s39
    %p41 = scmp.eq.s32.totalorder %s15, 0
    %p42 = por %p40, %p41
    %s44 = sadd.s32 %s43, 1
    %p47 = scmp.eq.s32.totalorder %s9, 1
    %p48 = scmp.ne.s32.totalorder %s43, %s45
    %p49 = scmp.eq.s32.totalorder %s9, 0
    %p50 = por %p48, %p49
    %p51 = scmp.ne.s32.totalorder %s43, %s45
    %p52 = scmp.eq.s32.totalorder %s14, 1
    %p53 = por %p51, %p52
    %p54 = scmp.ne.s32.totalorder %s45, %s46
    %p55 = scmp.eq.s32.totalorder %s14, 0
    %p56 = por %p54, %p55
    %p57 = scmp.ne.s32.totalorder %s45, %s46
    %p58 = scmp.eq.s32.totalorder %s15, 1
    %p59 = por %p57, %p58
    %p61 = scmp.ne.s32.totalorder %s46, %s60
    %p62 = scmp.eq.s32.totalorder %s15, 0
    %p63 = por %p61, %p62
    %s65 = sadd.s32 %s64, 1
    %p68 = scmp.eq.s32.totalorder %s9, 1
    %p69 = scmp.ne.s32.totalorder %s64, %s66
    %p70 = scmp.eq.s32.totalorder %s9, 0
    %p71 = por %p69, %p70
    %p72 = scmp.ne.s32.totalorder %s64, %s66
    %p73 = scmp.eq.s32.totalorder %s14, 1
    %p74 = por %p72, %p73
    %p75 = scmp.ne.s32.totalorder %s66, %s67
    %p76 = scmp.eq.s32.totalorder %s14, 0
    %p77 = por %p75, %p76
    %p78 = scmp.ne.s32.totalorder %s66, %s67
    %p79 = scmp.eq.s32.totalorder %s15, 1
    %p80 = por %p78, %p79
    %p82 = scmp.ne.s32.totalorder %s67, %s81
    %p83 = scmp.eq.s32.totalorder %s15, 0
    %p84 = por %p82, %p83
    %s85 = ssub.s32 %s9, %s16
    %p86 = scmp.eq.s32.totalorder %s85, 0
    %s88 = sadd.s32 %s87, 1
    %s89 = scalar_select %p86, %s87, %s88
    %p92 = pneg %p86
    %p93 = scmp.eq.s32.totalorder %s9, 1
    %p94 = por %p92, %p93
    %p95 = scmp.ne.s32.totalorder %s87, %s90
    %p96 = scmp.eq.s32.totalorder %s9, 0
    %p97 = por %p95, %p96
    %p98 = scmp.ne.s32.totalorder %s87, %s90
    %p99 = scmp.eq.s32.totalorder %s14, 1
    %p100 = por %p98, %p99
    %p101 = scmp.ne.s32.totalorder %s90, %s91
    %p102 = scmp.eq.s32.totalorder %s14, 0
    %p103 = por %p101, %p102
    %p104 = scmp.ne.s32.totalorder %s90, %s91
    %p105 = scmp.eq.s32.totalorder %s15, 1
    %p106 = por %p104, %p105
    %p108 = scmp.ne.s32.totalorder %s91, %s107
    %p109 = scmp.eq.s32.totalorder %s15, 0
    %p110 = por %p108, %p109
    %p111 = scmp.le.s32.totalorder 1, %s9
    %p112 = scmp.lt.s32.totalorder %s9, 3
    %p113 = pnand %p111, %p112
    %p114 = pneg %p113
    // Predicated region
    $region9: #{vgg_forward.4} parent=5 // pred_check
      _
    $region10: #{vgg_forward.4} parent=5 // pred_check_branch
      %116 = sbr.rel (%p113) target = $region12
    $region11: #{vgg_forward.4} parent=5 // pred_region
      %s117 = ssub.s32 %s9, 1
      // Predicated region
      $region13: #{vgg_forward.4} parent=11 // pred_check
        %p118 = pneg %p56
      $region14: #{vgg_forward.4} parent=11 // pred_check_branch
        %120 = sbr.rel (%p118) target = $region16
      $region15: #{vgg_forward.4} parent=11 // pred_region
        _
      $region16: #{vgg_forward.4} parent=11 // pred_fallthru
        _
      // Predicated region
      $region17: #{vgg_forward.4} parent=11 // pred_check
        %p121 = pneg %p77
      $region18: #{vgg_forward.4} parent=11 // pred_check_branch
        %123 = sbr.rel (%p121) target = $region20
      $region19: #{vgg_forward.4} parent=11 // pred_region
        _
      $region20: #{vgg_forward.4} parent=11 // pred_fallthru
        _
    $region12: #{vgg_forward.4} parent=5 // pred_fallthru
      _
    %p124 = scmp.lt.s32.totalorder %s9, 2
    // Predicated region
    $region21: #{vgg_forward.4} parent=5 // pred_check
      %p125 = pneg %p124
    $region22: #{vgg_forward.4} parent=5 // pred_check_branch
      %127 = sbr.rel (%p125) target = $region24
    $region23: #{vgg_forward.4} parent=5 // pred_region
      // Predicated region
      $region25: #{vgg_forward.4} parent=23 // pred_check
        %p128 = pneg %p29
      $region26: #{vgg_forward.4} parent=23 // pred_check_branch
        %130 = sbr.rel (%p128) target = $region28
      $region27: #{vgg_forward.4} parent=23 // pred_region
        %p131 = scmp.lt.s32.totalorder %s9, 1
        %s132 = scalar_select %p131, %s9, 1
        %s133 = smul.addr %s132, 56
        %s134 = smul.addr %s133, 4
        %s135 = scalar_lea.vmem %s0, %s134
      $region28: #{vgg_forward.4} parent=23 // pred_fallthru
        _
    $region24: #{vgg_forward.4} parent=5 // pred_fallthru
      _
    %p136 = scmp.le.s32.totalorder 1, %s9
    %p137 = scmp.lt.s32.totalorder %s9, 3
    %p138 = pnand %p136, %p137
    %p139 = pneg %p138
    // Predicated region
    $region29: #{vgg_forward.4} parent=5 // pred_check
      _
    $region30: #{vgg_forward.4} parent=5 // pred_check_branch
      %141 = sbr.rel (%p138) target = $region32
    $region31: #{vgg_forward.4} parent=5 // pred_region
      %s142 = ssub.s32 %s9, 1
      %p143 = scmp.lt.s32.totalorder %s14, 1
      %s144 = scalar_select %p143, %s14, 1
      %s145 = smul.addr %s144, 56
      %s146 = smul.addr %s145, 4
      %s147 = scalar_lea.vmem %s0, %s146
      %p148 = pneg %p35
      %p149 = pneg %p32
      %p150 = pneg %p56
      %p151 = pneg %p53
      %p152 = pneg %p77
      %p153 = pneg %p74
      %p154 = pneg %p103
      %p155 = pneg %p100
      %p156 = scmp.lt.s32.totalorder %s14, 1
      %s157 = scalar_select %p156, %s14, 1
      %s158 = smul.addr %s157, 7
      %s159 = smul.addr %s158, 4
      %s160 = scalar_lea.vmem %s3, %s159
      %p161 = scmp.lt.s32.totalorder %s14, 1
      %s162 = scalar_select %p161, %s14, 1
      %s163 = smul.addr %s162, 56
      %s164 = smul.addr %s163, 4
      %s165 = scalar_lea.vmem %s0, %s164
      %p166 = scmp.lt.s32.totalorder %s14, 1
      %s167 = scalar_select %p166, %s14, 1
      %s168 = smul.addr %s167, 7
      %s169 = smul.addr %s168, 4
      %s170 = scalar_lea.vmem %s3, %s169
      %v172 = vld [vmem:[%s1] sm:$0xf]
      %v173 = vld [vmem:[%s1 + $0x4] sm:$0xf]
      %v174 = vld [vmem:[%s1 + $0x8] sm:$0xf]
      %v175 = vld [vmem:[%s1 + $0xc] sm:$0xf]
      %v176 = vld [vmem:[%s1 + $0x10] sm:$0xf]
      %v177 = vld [vmem:[%s1 + $0x14] sm:$0xf]
      %v178 = vld [vmem:[%s1 + $0x18] sm:$0xf]
      %v179 = vld [vmem:[%s1 + $0x1c] sm:$0xf]
      %v180 = vld [vmem:[%s1 + $0x20] sm:$0xf]
      %v181 = vld [vmem:[%s1 + $0x24] sm:$0xf]
      %v182 = vld [vmem:[%s1 + $0x28] sm:$0xf]
      %v183 = vld [vmem:[%s1 + $0x2c] sm:$0xf]
      %v184 = vld [vmem:[%s1 + $0x30] sm:$0xf]
      %v185 = vld [vmem:[%s1 + $0x34] sm:$0xf]
      %v186 = vld [vmem:[%s1 + $0x38] sm:$0xf]
      %v187 = vld [vmem:[%s1 + $0x3c] sm:$0xf]
      %v188 = vld [vmem:[%s1 + $0x40] sm:$0xf]
      %v189 = vld [vmem:[%s1 + $0x44] sm:$0xf]
      %v190 = vld [vmem:[%s165] sm:$0xff]
      %v191 = vld [vmem:[%s165 + $0x8] sm:$0xff]
      %v192 = vld [vmem:[%s165 + $0x10] sm:$0xff]
      %v193 = vld [vmem:[%s165 + $0x18] sm:$0xff]
      %v194 = vld [vmem:[%s165 + $0x20] sm:$0xff]
      %v195 = vld [vmem:[%s165 + $0x28] sm:$0xff]
      %v196 = vld [vmem:[%s165 + $0x30] sm:$0x11]
      %v204 = vunpack.c.l.b16 %v190
      %v205 = vunpack.c.h.b16 %v190
      %v206 = vunpack.c.l.b16 %v191
      %v207 = vunpack.c.h.b16 %v191
      %v208 = vunpack.c.l.b16 %v192
      %v209 = vunpack.c.h.b16 %v192
      %v210 = vunpack.c.l.b16 %v193
      %v211 = vunpack.c.h.b16 %v193
      %v212 = vunpack.c.l.b16 %v194
      %v213 = vunpack.c.h.b16 %v194
      %v214 = vunpack.c.l.b16 %v195
      %v215 = vunpack.c.h.b16 %v195
      %v216 = vunpack.c.l.b16 %v196
      %v217 = vunpack.c.h.b16 %v196
      %v218 = vpack.c.b16 %v206, %v204
      %v219 = vpack.c.b16 %v207, %v205
      %v220 = vpack.c.b16 %v210, %v208
      %v221 = vpack.c.b16 %v211, %v209
      %v222 = vpack.c.b16 %v214, %v212
      %v223 = vpack.c.b16 %v215, %v213
      %v224 = vpack.c.b16 %v216, %v216
      %v225 = vpack.c.b16 %v217, %v217
      %v248 = vunpack.c.l.b16 %v172
      %v249 = vunpack.c.l.b16 %v173
      %v250 = vunpack.c.l.b16 %v174
      %v251 = vunpack.c.l.b16 %v175
      %v252 = vunpack.c.l.b16 %v176
      %v253 = vunpack.c.l.b16 %v177
      %v254 = vunpack.c.l.b16 %v178
      %v255 = vunpack.c.l.b16 %v179
      %v256 = vunpack.c.l.b16 %v180
      %v257 = vunpack.c.l.b16 %v181
      %v258 = vunpack.c.l.b16 %v182
      %v259 = vunpack.c.l.b16 %v183
      %v260 = vunpack.c.l.b16 %v184
      %v261 = vunpack.c.l.b16 %v185
      %v262 = vunpack.c.l.b16 %v186
      %v263 = vunpack.c.l.b16 %v187
      %v264 = vunpack.c.l.b16 %v188
      %v265 = vunpack.c.l.b16 %v189
      %v266 = vpack.c.b16 %v249, %v248
      %v267 = vpack.c.b16 %v251, %v250
      %v268 = vpack.c.b16 %v253, %v252
      %v269 = vpack.c.b16 %v255, %v254
      %v270 = vpack.c.b16 %v257, %v256
      %v271 = vpack.c.b16 %v259, %v258
      %v272 = vpack.c.b16 %v261, %v260
      %v273 = vpack.c.b16 %v263, %v262
      %v274 = vpack.c.b16 %v265, %v264
      %vm284 = vcmask 130048
      %v286 = vsel %vm284, %v219, 0
      %v289 = vsel %vm284, %v221, 0
      %v292 = vsel %vm284, %v223, 0
      %v295 = vsel %vm284, %v225, 0
      %297 = vmatpush.bf16.msra.mxu0 %v273
      %298 = vmatpush.bf16.msra.mxu0 %v272
      %299 = vmatpush.bf16.msra.mxu0 %v271
      %300 = vmatpush.bf16.msra.mxu0 %v270
      %301 = vmatpush.bf16.msra.mxu0 %v269
      %302 = vmatpush.bf16.msra.mxu0 %v268
      %303 = vmatpush.bf16.msra.mxu0 %v267
      %304 = vmatpush.bf16.msra.mxu0 %v266
      %305 = vmatmul.bf16.gmra.mxu0 %v218
      %v306 = vpop.f32.mrf.mxu0
      %v307 = vadd.f32 0.0, %v306
      %v308 = vpop.f32.mrf.mxu0
      %v309 = vadd.f32 0.0, %v308
      %310 = vmatmul.bf16.gmra.mxu0 %v220
      %v311 = vpop.f32.mrf.mxu0
      %v312 = vadd.f32 0.0, %v311
      %v313 = vpop.f32.mrf.mxu0
      %v314 = vadd.f32 0.0, %v313
      %315 = vmatmul.bf16.gmra.mxu0 %v222
      %v316 = vpop.f32.mrf.mxu0
      %v317 = vadd.f32 0.0, %v316
      %v318 = vpop.f32.mrf.mxu0
      %v319 = vadd.f32 0.0, %v318
      %320 = vmatmul.bf16.gmra.mxu0 %v224
      %v321 = vpop.f32.mrf.mxu0
      %v322 = vadd.f32 0.0, %v321
      %v323 = vpop.f32.mrf.mxu0
      %324 = vdwg.mxu0
      %325 = vmatpush.bf16.msra.mxu0 0
      %326 = vmatpush.bf16.msra.mxu0 0
      %327 = vmatpush.bf16.msra.mxu0 0
      %328 = vmatpush.bf16.msra.mxu0 0
      %329 = vmatpush.bf16.msra.mxu0 0
      %330 = vmatpush.bf16.msra.mxu0 0
      %331 = vmatpush.bf16.msra.mxu0 0
      %332 = vmatpush.bf16.msra.mxu0 %v274
      %333 = vmatmul.bf16.gmra.mxu0 %v286
      %v334 = vpop.f32.mrf.mxu0
      %v335 = vadd.f32 %v307, %v334
      %v336 = vpop.f32.mrf.mxu0
      %v337 = vadd.f32 %v309, %v336
      %338 = vmatmul.bf16.gmra.mxu0 %v289
      %v339 = vpop.f32.mrf.mxu0
      %v340 = vadd.f32 %v312, %v339
      %v341 = vpop.f32.mrf.mxu0
      %v342 = vadd.f32 %v314, %v341
      %343 = vmatmul.bf16.gmra.mxu0 %v292
      %v344 = vpop.f32.mrf.mxu0
      %v345 = vadd.f32 %v317, %v344
      %v346 = vpop.f32.mrf.mxu0
      %v347 = vadd.f32 %v319, %v346
      %348 = vmatmul.bf16.gmra.mxu0 %v295
      %v349 = vpop.f32.mrf.mxu0
      %v350 = vadd.f32 %v322, %v349
      %v351 = vpop.f32.mrf.mxu0
      %352 = vdwg.mxu0
      %s353 = scalar_lea.vmem %s165, 56
      %v354 = vld [vmem:[%s353] sm:$0xff]
      %v355 = vld [vmem:[%s353 + $0x8] sm:$0xff]
      %v356 = vld [vmem:[%s353 + $0x10] sm:$0xff]
      %v357 = vld [vmem:[%s353 + $0x18] sm:$0xff]
      %v358 = vld [vmem:[%s353 + $0x20] sm:$0xff]
      %v359 = vld [vmem:[%s353 + $0x28] sm:$0xff]
      %v360 = vld [vmem:[%s353 + $0x30] sm:$0x11]
      %v368 = vunpack.c.l.b16 %v354
      %v369 = vunpack.c.h.b16 %v354
      %v370 = vunpack.c.l.b16 %v355
      %v371 = vunpack.c.h.b16 %v355
      %v372 = vunpack.c.l.b16 %v356
      %v373 = vunpack.c.h.b16 %v356
      %v374 = vunpack.c.l.b16 %v357
      %v375 = vunpack.c.h.b16 %v357
      %v376 = vunpack.c.l.b16 %v358
      %v377 = vunpack.c.h.b16 %v358
      %v378 = vunpack.c.l.b16 %v359
      %v379 = vunpack.c.h.b16 %v359
      %v380 = vunpack.c.l.b16 %v360
      %v381 = vunpack.c.h.b16 %v360
      %v382 = vpack.c.b16 %v370, %v368
      %v383 = vpack.c.b16 %v371, %v369
      %v384 = vpack.c.b16 %v374, %v372
      %v385 = vpack.c.b16 %v375, %v373
      %v386 = vpack.c.b16 %v378, %v376
      %v387 = vpack.c.b16 %v379, %v377
      %v388 = vpack.c.b16 %v380, %v380
      %v389 = vpack.c.b16 %v381, %v381
      %v395 = vsel %vm284, %v383, 0
      %v398 = vsel %vm284, %v385, 0
      %v401 = vsel %vm284, %v387, 0
      %v404 = vsel %vm284, %v389, 0
      %406 = vmatpush.bf16.msra.mxu0 %v273
      %407 = vmatpush.bf16.msra.mxu0 %v272
      %408 = vmatpush.bf16.msra.mxu0 %v271
      %409 = vmatpush.bf16.msra.mxu0 %v270
      %410 = vmatpush.bf16.msra.mxu0 %v269
      %411 = vmatpush.bf16.msra.mxu0 %v268
      %412 = vmatpush.bf16.msra.mxu0 %v267
      %413 = vmatpush.bf16.msra.mxu0 %v266
      %414 = vmatmul.bf16.gmra.mxu0 %v382
      %v415 = vpop.f32.mrf.mxu0
      %v416 = vadd.f32 0.0, %v415
      %v417 = vpop.f32.mrf.mxu0
      %v418 = vadd.f32 0.0, %v417
      %419 = vmatmul.bf16.gmra.mxu0 %v384
      %v420 = vpop.f32.mrf.mxu0
      %v421 = vadd.f32 0.0, %v420
      %v422 = vpop.f32.mrf.mxu0
      %v423 = vadd.f32 0.0, %v422
      %424 = vmatmul.bf16.gmra.mxu0 %v386
      %v425 = vpop.f32.mrf.mxu0
      %v426 = vadd.f32 0.0, %v425
      %v427 = vpop.f32.mrf.mxu0
      %v428 = vadd.f32 0.0, %v427
      %429 = vmatmul.bf16.gmra.mxu0 %v388
      %v430 = vpop.f32.mrf.mxu0
      %v431 = vadd.f32 0.0, %v430
      %v432 = vpop.f32.mrf.mxu0
      %433 = vdwg.mxu0
      %434 = vmatpush.bf16.msra.mxu0 0
      %435 = vmatpush.bf16.msra.mxu0 0
      %436 = vmatpush.bf16.msra.mxu0 0
      %437 = vmatpush.bf16.msra.mxu0 0
      %438 = vmatpush.bf16.msra.mxu0 0
      %439 = vmatpush.bf16.msra.mxu0 0
      %440 = vmatpush.bf16.msra.mxu0 0
      %441 = vmatpush.bf16.msra.mxu0 %v274
      %442 = vmatmul.bf16.gmra.mxu0 %v395
      %v443 = vpop.f32.mrf.mxu0
      %v444 = vadd.f32 %v416, %v443
      %v445 = vpop.f32.mrf.mxu0
      %v446 = vadd.f32 %v418, %v445
      %447 = vmatmul.bf16.gmra.mxu0 %v398
      %v448 = vpop.f32.mrf.mxu0
      %v449 = vadd.f32 %v421, %v448
      %v450 = vpop.f32.mrf.mxu0
      %v451 = vadd.f32 %v423, %v450
      %452 = vmatmul.bf16.gmra.mxu0 %v401
      %v453 = vpop.f32.mrf.mxu0
      %v454 = vadd.f32 %v426, %v453
      %v455 = vpop.f32.mrf.mxu0
      %v456 = vadd.f32 %v428, %v455
      %457 = vmatmul.bf16.gmra.mxu0 %v404
      %v458 = vpop.f32.mrf.mxu0
      %v459 = vadd.f32 %v431, %v458
      %v460 = vpop.f32.mrf.mxu0
      %461 = vdwg.mxu0
      %v462 = vmax.f32 %v335, %v444
      %v463 = vmax.f32 %v337, %v446
      %v464 = vmax.f32 %v340, %v449
      %v465 = vmax.f32 %v342, %v451
      %v466 = vmax.f32 %v345, %v454
      %v467 = vmax.f32 %v347, %v456
      %v468 = vmax.f32 %v350, %v459
      %s469 = scalar_lea.vmem %s165, 112
      %v470 = vld [vmem:[%s469] sm:$0xff]
      %v471 = vld [vmem:[%s469 + $0x8] sm:$0xff]
      %v472 = vld [vmem:[%s469 + $0x10] sm:$0xff]
      %v473 = vld [vmem:[%s469 + $0x18] sm:$0xff]
      %v474 = vld [vmem:[%s469 + $0x20] sm:$0xff]
      %v475 = vld [vmem:[%s469 + $0x28] sm:$0xff]
      %v476 = vld [vmem:[%s469 + $0x30] sm:$0x11]
      %v484 = vunpack.c.l.b16 %v470
      %v485 = vunpack.c.h.b16 %v470
      %v486 = vunpack.c.l.b16 %v471
      %v487 = vunpack.c.h.b16 %v471
      %v488 = vunpack.c.l.b16 %v472
      %v489 = vunpack.c.h.b16 %v472
      %v490 = vunpack.c.l.b16 %v473
      %v491 = vunpack.c.h.b16 %v473
      %v492 = vunpack.c.l.b16 %v474
      %v493 = vunpack.c.h.b16 %v474
      %v494 = vunpack.c.l.b16 %v475
      %v495 = vunpack.c.h.b16 %v475
      %v496 = vunpack.c.l.b16 %v476
      %v497 = vunpack.c.h.b16 %v476
      %v498 = vpack.c.b16 %v486, %v484
      %v499 = vpack.c.b16 %v487, %v485
      %v500 = vpack.c.b16 %v490, %v488
      %v501 = vpack.c.b16 %v491, %v489
      %v502 = vpack.c.b16 %v494, %v492
      %v503 = vpack.c.b16 %v495, %v493
      %v504 = vpack.c.b16 %v496, %v496
      %v505 = vpack.c.b16 %v497, %v497
      %v511 = vsel %vm284, %v499, 0
      %v514 = vsel %vm284, %v501, 0
      %v517 = vsel %vm284, %v503, 0
      %v520 = vsel %vm284, %v505, 0
      %522 = vmatpush.bf16.msra.mxu0 %v273
      %523 = vmatpush.bf16.msra.mxu0 %v272
      %524 = vmatpush.bf16.msra.mxu0 %v271
      %525 = vmatpush.bf16.msra.mxu0 %v270
      %526 = vmatpush.bf16.msra.mxu0 %v269
      %527 = vmatpush.bf16.msra.mxu0 %v268
      %528 = vmatpush.bf16.msra.mxu0 %v267
      %529 = vmatpush.bf16.msra.mxu0 %v266
      %530 = vmatmul.bf16.gmra.mxu0 %v498
      %v531 = vpop.f32.mrf.mxu0
      %v532 = vadd.f32 0.0, %v531
      %v533 = vpop.f32.mrf.mxu0
      %v534 = vadd.f32 0.0, %v533
      %535 = vmatmul.bf16.gmra.mxu0 %v500
      %v536 = vpop.f32.mrf.mxu0
      %v537 = vadd.f32 0.0, %v536
      %v538 = vpop.f32.mrf.mxu0
      %v539 = vadd.f32 0.0, %v538
      %540 = vmatmul.bf16.gmra.mxu0 %v502
      %v541 = vpop.f32.mrf.mxu0
      %v542 = vadd.f32 0.0, %v541
      %v543 = vpop.f32.mrf.mxu0
      %v544 = vadd.f32 0.0, %v543
      %545 = vmatmul.bf16.gmra.mxu0 %v504
      %v546 = vpop.f32.mrf.mxu0
      %v547 = vadd.f32 0.0, %v546
      %v548 = vpop.f32.mrf.mxu0
      %549 = vdwg.mxu0
      %550 = vmatpush.bf16.msra.mxu0 0
      %551 = vmatpush.bf16.msra.mxu0 0
      %552 = vmatpush.bf16.msra.mxu0 0
      %553 = vmatpush.bf16.msra.mxu0 0
      %554 = vmatpush.bf16.msra.mxu0 0
      %555 = vmatpush.bf16.msra.mxu0 0
      %556 = vmatpush.bf16.msra.mxu0 0
      %557 = vmatpush.bf16.msra.mxu0 %v274
      %558 = vmatmul.bf16.gmra.mxu0 %v511
      %v559 = vpop.f32.mrf.mxu0
      %v560 = vadd.f32 %v532, %v559
      %v561 = vpop.f32.mrf.mxu0
      %v562 = vadd.f32 %v534, %v561
      %563 = vmatmul.bf16.gmra.mxu0 %v514
      %v564 = vpop.f32.mrf.mxu0
      %v565 = vadd.f32 %v537, %v564
      %v566 = vpop.f32.mrf.mxu0
      %v567 = vadd.f32 %v539, %v566
      %568 = vmatmul.bf16.gmra.mxu0 %v517
      %v569 = vpop.f32.mrf.mxu0
      %v570 = vadd.f32 %v542, %v569
      %v571 = vpop.f32.mrf.mxu0
      %v572 = vadd.f32 %v544, %v571
      %573 = vmatmul.bf16.gmra.mxu0 %v520
      %v574 = vpop.f32.mrf.mxu0
      %v575 = vadd.f32 %v547, %v574
      %v576 = vpop.f32.mrf.mxu0
      %577 = vdwg.mxu0
      %v578 = vmax.f32 %v462, %v560
      %v579 = vmax.f32 %v463, %v562
      %v580 = vmax.f32 %v464, %v565
      %v581 = vmax.f32 %v465, %v567
      %v582 = vmax.f32 %v466, %v570
      %v583 = vmax.f32 %v467, %v572
      %v584 = vmax.f32 %v468, %v575
      %s585 = scalar_lea.vmem %s165, 168
      %v586 = vld [vmem:[%s585] sm:$0xff]
      %v587 = vld [vmem:[%s585 + $0x8] sm:$0xff]
      %v588 = vld [vmem:[%s585 + $0x10] sm:$0xff]
      %v589 = vld [vmem:[%s585 + $0x18] sm:$0xff]
      %v590 = vld [vmem:[%s585 + $0x20] sm:$0xff]
      %v591 = vld [vmem:[%s585 + $0x28] sm:$0xff]
      %v592 = vld [vmem:[%s585 + $0x30] sm:$0x11]
      %v600 = vunpack.c.l.b16 %v586
      %v601 = vunpack.c.h.b16 %v586
      %v602 = vunpack.c.l.b16 %v587
      %v603 = vunpack.c.h.b16 %v587
      %v604 = vunpack.c.l.b16 %v588
      %v605 = vunpack.c.h.b16 %v588
      %v606 = vunpack.c.l.b16 %v589
      %v607 = vunpack.c.h.b16 %v589
      %v608 = vunpack.c.l.b16 %v590
      %v609 = vunpack.c.h.b16 %v590
      %v610 = vunpack.c.l.b16 %v591
      %v611 = vunpack.c.h.b16 %v591
      %v612 = vunpack.c.l.b16 %v592
      %v613 = vunpack.c.h.b16 %v592
      %v614 = vpack.c.b16 %v602, %v600
      %v615 = vpack.c.b16 %v603, %v601
      %v616 = vpack.c.b16 %v606, %v604
      %v617 = vpack.c.b16 %v607, %v605
      %v618 = vpack.c.b16 %v610, %v608
      %v619 = vpack.c.b16 %v611, %v609
      %v620 = vpack.c.b16 %v612, %v612
      %v621 = vpack.c.b16 %v613, %v613
      %v627 = vsel %vm284, %v615, 0
      %v630 = vsel %vm284, %v617, 0
      %v633 = vsel %vm284, %v619, 0
      %v636 = vsel %vm284, %v621, 0
      %638 = vmatpush.bf16.msra.mxu0 %v273
      %639 = vmatpush.bf16.msra.mxu0 %v272
      %640 = vmatpush.bf16.msra.mxu0 %v271
      %641 = vmatpush.bf16.msra.mxu0 %v270
      %642 = vmatpush.bf16.msra.mxu0 %v269
      %643 = vmatpush.bf16.msra.mxu0 %v268
      %644 = vmatpush.bf16.msra.mxu0 %v267
      %645 = vmatpush.bf16.msra.mxu0 %v266
      %646 = vmatmul.bf16.gmra.mxu0 %v614
      %v647 = vpop.f32.mrf.mxu0
      %v648 = vadd.f32 0.0, %v647
      %v649 = vpop.f32.mrf.mxu0
      %v650 = vadd.f32 0.0, %v649
      %651 = vmatmul.bf16.gmra.mxu0 %v616
      %v652 = vpop.f32.mrf.mxu0
      %v653 = vadd.f32 0.0, %v652
      %v654 = vpop.f32.mrf.mxu0
      %v655 = vadd.f32 0.0, %v654
      %656 = vmatmul.bf16.gmra.mxu0 %v618
      %v657 = vpop.f32.mrf.mxu0
      %v658 = vadd.f32 0.0, %v657
      %v659 = vpop.f32.mrf.mxu0
      %v660 = vadd.f32 0.0, %v659
      %661 = vmatmul.bf16.gmra.mxu0 %v620
      %v662 = vpop.f32.mrf.mxu0
      %v663 = vadd.f32 0.0, %v662
      %v664 = vpop.f32.mrf.mxu0
      %665 = vdwg.mxu0
      %666 = vmatpush.bf16.msra.mxu0 0
      %667 = vmatpush.bf16.msra.mxu0 0
      %668 = vmatpush.bf16.msra.mxu0 0
      %669 = vmatpush.bf16.msra.mxu0 0
      %670 = vmatpush.bf16.msra.mxu0 0
      %671 = vmatpush.bf16.msra.mxu0 0
      %672 = vmatpush.bf16.msra.mxu0 0
      %673 = vmatpush.bf16.msra.mxu0 %v274
      %674 = vmatmul.bf16.gmra.mxu0 %v627
      %v675 = vpop.f32.mrf.mxu0
      %v676 = vadd.f32 %v648, %v675
      %v677 = vpop.f32.mrf.mxu0
      %v678 = vadd.f32 %v650, %v677
      %679 = vmatmul.bf16.gmra.mxu0 %v630
      %v680 = vpop.f32.mrf.mxu0
      %v681 = vadd.f32 %v653, %v680
      %v682 = vpop.f32.mrf.mxu0
      %v683 = vadd.f32 %v655, %v682
      %684 = vmatmul.bf16.gmra.mxu0 %v633
      %v685 = vpop.f32.mrf.mxu0
      %v686 = vadd.f32 %v658, %v685
      %v687 = vpop.f32.mrf.mxu0
      %v688 = vadd.f32 %v660, %v687
      %689 = vmatmul.bf16.gmra.mxu0 %v636
      %v690 = vpop.f32.mrf.mxu0
      %v691 = vadd.f32 %v663, %v690
      %v692 = vpop.f32.mrf.mxu0
      %693 = vdwg.mxu0
      %v694 = vmax.f32 %v578, %v676
      %v695 = vmax.f32 %v579, %v678
      %v696 = vmax.f32 %v580, %v681
      %v697 = vmax.f32 %v581, %v683
      %v698 = vmax.f32 %v582, %v686
      %v699 = vmax.f32 %v583, %v688
      %v700 = vmax.f32 %v584, %v691
      %v701 = vld [vmem:[%s2] sm:$0x1]
      %v703 = vperm.slane %v701, 0
      %v705 = vadd.f32 %v694, %v703
      %v706 = vadd.f32 %v695, %v703
      %v707 = vadd.f32 %v696, %v703
      %v708 = vadd.f32 %v697, %v703
      %v709 = vadd.f32 %v698, %v703
      %v710 = vadd.f32 %v699, %v703
      %v711 = vadd.f32 %v700, %v703
      %v712 = vmax.f32 %v705, 0.0
      %v713 = vmax.f32 %v706, 0.0
      %v714 = vmax.f32 %v707, 0.0
      %v715 = vmax.f32 %v708, 0.0
      %v716 = vmax.f32 %v709, 0.0
      %v717 = vmax.f32 %v710, 0.0
      %v718 = vmax.f32 %v711, 0.0
      %v719 = vpack.c.bf16 %v712, %v712
      %v720 = vpack.c.bf16 %v713, %v713
      %v721 = vpack.c.bf16 %v714, %v714
      %v722 = vpack.c.bf16 %v715, %v715
      %v723 = vpack.c.bf16 %v716, %v716
      %v724 = vpack.c.bf16 %v717, %v717
      %v725 = vpack.c.bf16 %v718, %v718
      %vm726 = vcmask 257024
      %727 = vst.msk [vmem:[%s170] sm:$0xf] %vm726, %v719
      %728 = vst.msk [vmem:[%s170 + $0x4] sm:$0xf] %vm726, %v720
      %729 = vst.msk [vmem:[%s170 + $0x8] sm:$0xf] %vm726, %v721
      %730 = vst.msk [vmem:[%s170 + $0xc] sm:$0xf] %vm726, %v722
      %731 = vst.msk [vmem:[%s170 + $0x10] sm:$0xf] %vm726, %v723
      %732 = vst.msk [vmem:[%s170 + $0x14] sm:$0xf] %vm726, %v724
      %vm733 = vcmask 253952
      %vm734 = vsmask.f32 256
      %vm735 = vmand %vm733, %vm734
      %v736 = vld [vmem:[%s170 + $0x18] sm:$0x1]
      %v737 = vsel %vm735, %v725, %v736
      %738 = vst [vmem:[%s170 + $0x18] sm:$0x1] %v737
      %p739 = scmp.lt.s32.totalorder %s14, 1
      %s740 = scalar_select %p739, %s14, 1
      %s741 = smul.addr %s740, 7
      %s742 = smul.addr %s741, 4
      %s743 = scalar_lea.vmem %s3, %s742
      // Predicated region
      $region33: #{vgg_forward.4} parent=31 // pred_check
        %p744 = pneg %p100
      $region34: #{vgg_forward.4} parent=31 // pred_check_branch
        %746 = sbr.rel (%p744) target = $region36
      $region35: #{vgg_forward.4} parent=31 // pred_region
        _
      $region36: #{vgg_forward.4} parent=31 // pred_fallthru
        _
    $region32: #{vgg_forward.4} parent=5 // pred_fallthru
      _
    %p747 = scmp.le.s32.totalorder 2, %s9
    // Predicated region
    $region37: #{vgg_forward.4} parent=5 // pred_check
      %p748 = pneg %p747
    $region38: #{vgg_forward.4} parent=5 // pred_check_branch
      %750 = sbr.rel (%p748) target = $region40
    $region39: #{vgg_forward.4} parent=5 // pred_region
      %s751 = ssub.s32 %s9, 2
      // Predicated region
      $region41: #{vgg_forward.4} parent=39 // pred_check
        %p752 = pneg %p106
      $region42: #{vgg_forward.4} parent=39 // pred_check_branch
        %754 = sbr.rel (%p752) target = $region44
      $region43: #{vgg_forward.4} parent=39 // pred_region
        %p755 = scmp.lt.s32.totalorder %s15, 1
        %s756 = scalar_select %p755, %s15, 1
        %s757 = smul.addr %s756, 7
        %s758 = smul.addr %s757, 4
        %s759 = scalar_lea.vmem %s3, %s758
      $region44: #{vgg_forward.4} parent=39 // pred_fallthru
        _
    $region40: #{vgg_forward.4} parent=5 // pred_fallthru
      _
  $region6: #{vgg_forward.4} parent=0 // loop_footer
    %s13 = sadd.s32 1, %s9
  $region7: #{vgg_forward.4} parent=0 // loop_footer_branch
    %8 = sbr.rel target = $region3
  $region8: #{vgg_forward.4} parent=0 // loop_exit
    _

// kernel: vgg_forward.5
$region0: #{vgg_forward.5}
  #allocation0 [shape = 'u32[]', space=smem, size = 0x4, offset = 0x4, fixed_abs, tag = 'smem constant byte address 0x4 - core index']
  #allocation1 [shape = 'u32[72,128]{1,0:T(1,128)}', space=vmem, size = 0x9000, scoped, tag = 'internal scratch']
  %s0 = inlined_call_operand.vmem [shape: bf16[2,1568], index: 0, kind: input, shape index: {}]
  %s1 = inlined_call_operand.vmem [shape: bf16[1568,128], index: 1, kind: input, shape index: {}]
  %s2 = inlined_call_operand.vmem [shape: f32[1,128], index: 2, kind: input, shape index: {}]
  %s3 = inlined_call_operand.vmem [shape: bf16[128,128], index: 3, kind: input, shape index: {}]
  %s4 = inlined_call_operand.vmem [shape: f32[1,128], index: 4, kind: input, shape index: {}]
  %s5 = inlined_call_operand.vmem [shape: bf16[128,10], index: 5, kind: input, shape index: {}]
  %s6 = inlined_call_operand.vmem [shape: f32[1,10], index: 6, kind: input, shape index: {}]
  %s7 = inlined_call_operand.hbm [shape: f32[2,10], index: 7, kind: output, shape index: {}]
  %s8 = sld [smem:[#allocation0]]
  $region38: #{vgg_forward.5} parent=0
    _
  %s10 = ssub.s32 1, %s8
  %s11 = scalar_select 0, %s10, %s8
  $region1: #{vgg_forward.5} parent=0
    #allocation2 [shape = 'u8[1024]{0}', space=vmem, size = 0x400, scoped, tag = 'output window, operand 0, single buffered']
    #allocation3 [shape = 's32[1]{0}', space=sflag, size = 0x4, scoped, tag = 'scoped memory for vgg_forward.5']
    %12 = vsyncpa [#allocation3], 0
    // Predicated region
    $region2: #{vgg_forward.5} parent=1 // pred_check
      _
    $region3: #{vgg_forward.5} parent=1 // pred_check_branch
      %14 = sbr.rel (0) target = $region5
    $region4: #{vgg_forward.5} parent=1 // pred_region
      _
    $region5: #{vgg_forward.5} parent=1 // pred_fallthru
      _
    // Predicated region
    $region6: #{vgg_forward.5} parent=1 // pred_check
      _
    $region7: #{vgg_forward.5} parent=1 // pred_check_branch
      %16 = sbr.rel (0) target = $region9
    $region8: #{vgg_forward.5} parent=1 // pred_region
      _
    $region9: #{vgg_forward.5} parent=1 // pred_fallthru
      _
    // Predicated region
    $region10: #{vgg_forward.5} parent=1 // pred_check
      _
    $region11: #{vgg_forward.5} parent=1 // pred_check_branch
      %18 = sbr.rel (0) target = $region13
    $region12: #{vgg_forward.5} parent=1 // pred_region
      _
    $region13: #{vgg_forward.5} parent=1 // pred_fallthru
      _
    // Predicated region
    $region14: #{vgg_forward.5} parent=1 // pred_check
      _
    $region15: #{vgg_forward.5} parent=1 // pred_check_branch
      %20 = sbr.rel (0) target = $region17
    $region16: #{vgg_forward.5} parent=1 // pred_region
      _
    $region17: #{vgg_forward.5} parent=1 // pred_fallthru
      _
    // Predicated region
    $region18: #{vgg_forward.5} parent=1 // pred_check
      _
    $region19: #{vgg_forward.5} parent=1 // pred_check_branch
      %22 = sbr.rel (0) target = $region21
    $region20: #{vgg_forward.5} parent=1 // pred_region
      _
    $region21: #{vgg_forward.5} parent=1 // pred_fallthru
      _
    // Predicated region
    $region22: #{vgg_forward.5} parent=1 // pred_check
      _
    $region23: #{vgg_forward.5} parent=1 // pred_check_branch
      %24 = sbr.rel (0) target = $region25
    $region24: #{vgg_forward.5} parent=1 // pred_region
      _
    $region25: #{vgg_forward.5} parent=1 // pred_fallthru
      _
    // Predicated region
    $region26: #{vgg_forward.5} parent=1 // pred_check
      _
    $region27: #{vgg_forward.5} parent=1 // pred_check_branch
      %26 = sbr.rel (0) target = $region29
    $region28: #{vgg_forward.5} parent=1 // pred_region
      _
    $region29: #{vgg_forward.5} parent=1 // pred_fallthru
      _
    %v28 = vld [vmem:[%s0] sm:$0xff]
    %v29 = vld [vmem:[%s0 + $0x8] sm:$0x1f]
    %v30 = vld [vmem:[%s1] sm:$0xf]
    %v31 = vld [vmem:[%s1 + $0x4] sm:$0xf]
    %v32 = vld [vmem:[%s1 + $0x8] sm:$0xf]
    %v33 = vld [vmem:[%s1 + $0xc] sm:$0xf]
    %v34 = vld [vmem:[%s1 + $0x10] sm:$0xf]
    %v35 = vld [vmem:[%s1 + $0x14] sm:$0xf]
    %v36 = vld [vmem:[%s1 + $0x18] sm:$0xf]
    %v37 = vld [vmem:[%s1 + $0x1c] sm:$0xf]
    %v38 = vld [vmem:[%s1 + $0x20] sm:$0xf]
    %v39 = vld [vmem:[%s1 + $0x24] sm:$0xf]
    %v40 = vld [vmem:[%s1 + $0x28] sm:$0xf]
    %v41 = vld [vmem:[%s1 + $0x2c] sm:$0xf]
    %v42 = vld [vmem:[%s1 + $0x30] sm:$0xf]
    %v43 = vld [vmem:[%s1 + $0x34] sm:$0xf]
    %v44 = vld [vmem:[%s1 + $0x38] sm:$0xf]
    %v45 = vld [vmem:[%s1 + $0x3c] sm:$0xf]
    %v46 = vld [vmem:[%s1 + $0x40] sm:$0xf]
    %v47 = vld [vmem:[%s1 + $0x44] sm:$0xf]
    %v48 = vld [vmem:[%s1 + $0x48] sm:$0xf]
    %v49 = vld [vmem:[%s1 + $0x4c] sm:$0xf]
    %v50 = vld [vmem:[%s1 + $0x50] sm:$0xf]
    %v51 = vld [vmem:[%s1 + $0x54] sm:$0xf]
    %v52 = vld [vmem:[%s1 + $0x58] sm:$0xf]
    %v53 = vld [vmem:[%s1 + $0x5c] sm:$0xf]
    %v54 = vld [vmem:[%s1 + $0x60] sm:$0xf]
    %v55 = vld [vmem:[%s1 + $0x64] sm:$0xf]
    %v56 = vld [vmem:[%s1 + $0x68] sm:$0xf]
    %v57 = vld [vmem:[%s1 + $0x6c] sm:$0xf]
    %v58 = vld [vmem:[%s1 + $0x70] sm:$0xf]
    %v59 = vld [vmem:[%s1 + $0x74] sm:$0xf]
    %v60 = vld [vmem:[%s1 + $0x78] sm:$0xf]
    %v61 = vld [vmem:[%s1 + $0x7c] sm:$0xf]
    %v62 = vld [vmem:[%s1 + $0x80] sm:$0xf]
    %v63 = vld [vmem:[%s1 + $0x84] sm:$0xf]
    %v64 = vld [vmem:[%s1 + $0x88] sm:$0xf]
    %v65 = vld [vmem:[%s1 + $0x8c] sm:$0xf]
    %v66 = vld [vmem:[%s1 + $0x90] sm:$0xf]
    %v67 = vld [vmem:[%s1 + $0x94] sm:$0xf]
    %v68 = vld [vmem:[%s1 + $0x98] sm:$0xf]
    %v69 = vld [vmem:[%s1 + $0x9c] sm:$0xf]
    %v70 = vld [vmem:[%s1 + $0xa0] sm:$0xf]
    %v71 = vld [vmem:[%s1 + $0xa4] sm:$0xf]
    %v72 = vld [vmem:[%s1 + $0xa8] sm:$0xf]
    %v73 = vld [vmem:[%s1 + $0xac] sm:$0xf]
    %v74 = vld [vmem:[%s1 + $0xb0] sm:$0xf]
    %v75 = vld [vmem:[%s1 + $0xb4] sm:$0xf]
    %v76 = vld [vmem:[%s1 + $0xb8] sm:$0xf]
    %v77 = vld [vmem:[%s1 + $0xbc] sm:$0xf]
    %v78 = vld [vmem:[%s1 + $0xc0] sm:$0xf]
    %v79 = vld [vmem:[%s1 + $0xc4] sm:$0xf]
    %v80 = vld [vmem:[%s1 + $0xc8] sm:$0xf]
    %v81 = vld [vmem:[%s1 + $0xcc] sm:$0xf]
    %v82 = vld [vmem:[%s1 + $0xd0] sm:$0xf]
    %v83 = vld [vmem:[%s1 + $0xd4] sm:$0xf]
    %v84 = vld [vmem:[%s1 + $0xd8] sm:$0xf]
    %v85 = vld [vmem:[%s1 + $0xdc] sm:$0xf]
    %v86 = vld [vmem:[%s1 + $0xe0] sm:$0xf]
    %v87 = vld [vmem:[%s1 + $0xe4] sm:$0xf]
    %v88 = vld [vmem:[%s1 + $0xe8] sm:$0xf]
    %v89 = vld [vmem:[%s1 + $0xec] sm:$0xf]
    %v90 = vld [vmem:[%s1 + $0xf0] sm:$0xf]
    %v91 = vld [vmem:[%s1 + $0xf4] sm:$0xf]
    %v92 = vld [vmem:[%s1 + $0xf8] sm:$0xf]
    %v93 = vld [vmem:[%s1 + $0xfc] sm:$0xf]
    %v94 = vld [vmem:[%s1 + $0x100] sm:$0xf]
    %v95 = vld [vmem:[%s1 + $0x104] sm:$0xf]
    %v96 = vld [vmem:[%s1 + $0x108] sm:$0xf]
    %v97 = vld [vmem:[%s1 + $0x10c] sm:$0xf]
    %v98 = vld [vmem:[%s1 + $0x110] sm:$0xf]
    %v99 = vld [vmem:[%s1 + $0x114] sm:$0xf]
    %v100 = vld [vmem:[%s1 + $0x118] sm:$0xf]
    %v101 = vld [vmem:[%s1 + $0x11c] sm:$0xf]
    %v102 = vld [vmem:[%s1 + $0x120] sm:$0xf]
    %v103 = vld [vmem:[%s1 + $0x124] sm:$0xf]
    %v104 = vld [vmem:[%s1 + $0x128] sm:$0xf]
    %v105 = vld [vmem:[%s1 + $0x12c] sm:$0xf]
    %v106 = vld [vmem:[%s1 + $0x130] sm:$0xf]
    %v107 = vld [vmem:[%s1 + $0x134] sm:$0xf]
    %v108 = vld [vmem:[%s1 + $0x138] sm:$0xf]
    %v109 = vld [vmem:[%s1 + $0x13c] sm:$0xf]
    %v110 = vld [vmem:[%s1 + $0x140] sm:$0xf]
    %v111 = vld [vmem:[%s1 + $0x144] sm:$0xf]
    %v112 = vld [vmem:[%s1 + $0x148] sm:$0xf]
    %v113 = vld [vmem:[%s1 + $0x14c] sm:$0xf]
    %v114 = vld [vmem:[%s1 + $0x150] sm:$0xf]
    %v115 = vld [vmem:[%s1 + $0x154] sm:$0xf]
    %v116 = vld [vmem:[%s1 + $0x158] sm:$0xf]
    %v117 = vld [vmem:[%s1 + $0x15c] sm:$0xf]
    %v118 = vld [vmem:[%s1 + $0x160] sm:$0xf]
    %v119 = vld [vmem:[%s1 + $0x164] sm:$0xf]
    %v120 = vld [vmem:[%s1 + $0x168] sm:$0xf]
    %v121 = vld [vmem:[%s1 + $0x16c] sm:$0xf]
    %v122 = vld [vmem:[%s1 + $0x170] sm:$0xf]
    %v123 = vld [vmem:[%s1 + $0x174] sm:$0xf]
    %v124 = vld [vmem:[%s1 + $0x178] sm:$0xf]
    %v125 = vld [vmem:[%s1 + $0x17c] sm:$0xf]
    %v126 = vld [vmem:[%s1 + $0x180] sm:$0xf]
    %v127 = vld [vmem:[%s1 + $0x184] sm:$0xf]
    %v128 = vld [vmem:[%s1 + $0x188] sm:$0xf]
    %v129 = vld [vmem:[%s1 + $0x18c] sm:$0xf]
    %v130 = vld [vmem:[%s1 + $0x190] sm:$0xf]
    %v131 = vld [vmem:[%s1 + $0x194] sm:$0xf]
    %v132 = vld [vmem:[%s1 + $0x198] sm:$0xf]
    %v133 = vld [vmem:[%s1 + $0x19c] sm:$0xf]
    %v134 = vld [vmem:[%s1 + $0x1a0] sm:$0xf]
    %v135 = vld [vmem:[%s1 + $0x1a4] sm:$0xf]
    %v136 = vld [vmem:[%s1 + $0x1a8] sm:$0xf]
    %v137 = vld [vmem:[%s1 + $0x1ac] sm:$0xf]
    %v138 = vld [vmem:[%s1 + $0x1b0] sm:$0xf]
    %v139 = vld [vmem:[%s1 + $0x1b4] sm:$0xf]
    %v140 = vld [vmem:[%s1 + $0x1b8] sm:$0xf]
    %v141 = vld [vmem:[%s1 + $0x1bc] sm:$0xf]
    %v142 = vld [vmem:[%s1 + $0x1c0] sm:$0xf]
    %v143 = vld [vmem:[%s1 + $0x1c4] sm:$0xf]
    %v144 = vld [vmem:[%s1 + $0x1c8] sm:$0xf]
    %v145 = vld [vmem:[%s1 + $0x1cc] sm:$0xf]
    %v146 = vld [vmem:[%s1 + $0x1d0] sm:$0xf]
    %v147 = vld [vmem:[%s1 + $0x1d4] sm:$0xf]
    %v148 = vld [vmem:[%s1 + $0x1d8] sm:$0xf]
    %v149 = vld [vmem:[%s1 + $0x1dc] sm:$0xf]
    %v150 = vld [vmem:[%s1 + $0x1e0] sm:$0xf]
    %v151 = vld [vmem:[%s1 + $0x1e4] sm:$0xf]
    %v152 = vld [vmem:[%s1 + $0x1e8] sm:$0xf]
    %v153 = vld [vmem:[%s1 + $0x1ec] sm:$0xf]
    %v154 = vld [vmem:[%s1 + $0x1f0] sm:$0xf]
    %v155 = vld [vmem:[%s1 + $0x1f4] sm:$0xf]
    %v156 = vld [vmem:[%s1 + $0x1f8] sm:$0xf]
    %v157 = vld [vmem:[%s1 + $0x1fc] sm:$0xf]
    %v158 = vld [vmem:[%s1 + $0x200] sm:$0xf]
    %v159 = vld [vmem:[%s1 + $0x204] sm:$0xf]
    %v160 = vld [vmem:[%s1 + $0x208] sm:$0xf]
    %v161 = vld [vmem:[%s1 + $0x20c] sm:$0xf]
    %v162 = vld [vmem:[%s1 + $0x210] sm:$0xf]
    %v163 = vld [vmem:[%s1 + $0x214] sm:$0xf]
    %v164 = vld [vmem:[%s1 + $0x218] sm:$0xf]
    %v165 = vld [vmem:[%s1 + $0x21c] sm:$0xf]
    %v166 = vld [vmem:[%s1 + $0x220] sm:$0xf]
    %v167 = vld [vmem:[%s1 + $0x224] sm:$0xf]
    %v168 = vld [vmem:[%s1 + $0x228] sm:$0xf]
    %v169 = vld [vmem:[%s1 + $0x22c] sm:$0xf]
    %v170 = vld [vmem:[%s1 + $0x230] sm:$0xf]
    %v171 = vld [vmem:[%s1 + $0x234] sm:$0xf]
    %v172 = vld [vmem:[%s1 + $0x238] sm:$0xf]
    %v173 = vld [vmem:[%s1 + $0x23c] sm:$0xf]
    %v174 = vld [vmem:[%s1 + $0x240] sm:$0xf]
    %v175 = vld [vmem:[%s1 + $0x244] sm:$0xf]
    %v176 = vld [vmem:[%s1 + $0x248] sm:$0xf]
    %v177 = vld [vmem:[%s1 + $0x24c] sm:$0xf]
    %v178 = vld [vmem:[%s1 + $0x250] sm:$0xf]
    %v179 = vld [vmem:[%s1 + $0x254] sm:$0xf]
    %v180 = vld [vmem:[%s1 + $0x258] sm:$0xf]
    %v181 = vld [vmem:[%s1 + $0x25c] sm:$0xf]
    %v182 = vld [vmem:[%s1 + $0x260] sm:$0xf]
    %v183 = vld [vmem:[%s1 + $0x264] sm:$0xf]
    %v184 = vld [vmem:[%s1 + $0x268] sm:$0xf]
    %v185 = vld [vmem:[%s1 + $0x26c] sm:$0xf]
    %v186 = vld [vmem:[%s1 + $0x270] sm:$0xf]
    %v187 = vld [vmem:[%s1 + $0x274] sm:$0xf]
    %v188 = vld [vmem:[%s1 + $0x278] sm:$0xf]
    %v189 = vld [vmem:[%s1 + $0x27c] sm:$0xf]
    %v190 = vld [vmem:[%s1 + $0x280] sm:$0xf]
    %v191 = vld [vmem:[%s1 + $0x284] sm:$0xf]
    %v192 = vld [vmem:[%s1 + $0x288] sm:$0xf]
    %v193 = vld [vmem:[%s1 + $0x28c] sm:$0xf]
    %v194 = vld [vmem:[%s1 + $0x290] sm:$0xf]
    %v195 = vld [vmem:[%s1 + $0x294] sm:$0xf]
    %v196 = vld [vmem:[%s1 + $0x298] sm:$0xf]
    %v197 = vld [vmem:[%s1 + $0x29c] sm:$0xf]
    %v198 = vld [vmem:[%s1 + $0x2a0] sm:$0xf]
    %v199 = vld [vmem:[%s1 + $0x2a4] sm:$0xf]
    %v200 = vld [vmem:[%s1 + $0x2a8] sm:$0xf]
    %v201 = vld [vmem:[%s1 + $0x2ac] sm:$0xf]
    %v202 = vld [vmem:[%s1 + $0x2b0] sm:$0xf]
    %v203 = vld [vmem:[%s1 + $0x2b4] sm:$0xf]
    %v204 = vld [vmem:[%s1 + $0x2b8] sm:$0xf]
    %v205 = vld [vmem:[%s1 + $0x2bc] sm:$0xf]
    %v206 = vld [vmem:[%s1 + $0x2c0] sm:$0xf]
    %v207 = vld [vmem:[%s1 + $0x2c4] sm:$0xf]
    %v208 = vld [vmem:[%s1 + $0x2c8] sm:$0xf]
    %v209 = vld [vmem:[%s1 + $0x2cc] sm:$0xf]
    %v210 = vld [vmem:[%s1 + $0x2d0] sm:$0xf]
    %v211 = vld [vmem:[%s1 + $0x2d4] sm:$0xf]
    %v212 = vld [vmem:[%s1 + $0x2d8] sm:$0xf]
    %v213 = vld [vmem:[%s1 + $0x2dc] sm:$0xf]
    %v214 = vld [vmem:[%s1 + $0x2e0] sm:$0xf]
    %v215 = vld [vmem:[%s1 + $0x2e4] sm:$0xf]
    %v216 = vld [vmem:[%s1 + $0x2e8] sm:$0xf]
    %v217 = vld [vmem:[%s1 + $0x2ec] sm:$0xf]
    %v218 = vld [vmem:[%s1 + $0x2f0] sm:$0xf]
    %v219 = vld [vmem:[%s1 + $0x2f4] sm:$0xf]
    %v220 = vld [vmem:[%s1 + $0x2f8] sm:$0xf]
    %v221 = vld [vmem:[%s1 + $0x2fc] sm:$0xf]
    %v222 = vld [vmem:[%s1 + $0x300] sm:$0xf]
    %v223 = vld [vmem:[%s1 + $0x304] sm:$0xf]
    %v224 = vld [vmem:[%s1 + $0x308] sm:$0xf]
    %v225 = vld [vmem:[%s1 + $0x30c] sm:$0xf]
    %v226 = vld [vmem:[%s2] sm:$0x1]
    %v228 = vperm.slane %v226, 0
    %231 = vst [vmem:[#allocation1] ss:$9 sm:$0xff] %v28
    %v232 = vld [vmem:[#allocation1] sm:$0xff]
    %v233 = vld [vmem:[#allocation1 + $0x9] sm:$0xff]
    %v234 = vld [vmem:[#allocation1 + $0x12] sm:$0xff]
    %v235 = vld [vmem:[#allocation1 + $0x1b] sm:$0xff]
    %v236 = vld [vmem:[#allocation1 + $0x24] sm:$0xff]
    %v237 = vld [vmem:[#allocation1 + $0x2d] sm:$0xff]
    %v238 = vld [vmem:[#allocation1 + $0x36] sm:$0xff]
    %v239 = vld [vmem:[#allocation1 + $0x3f] sm:$0xff]
    %241 = vst [vmem:[#allocation1] ss:$9 sm:$0xff] %v29
    %v242 = vld [vmem:[#allocation1] sm:$0xff]
    %v243 = vld [vmem:[#allocation1 + $0x9] sm:$0xff]
    %v244 = vld [vmem:[#allocation1 + $0x12] sm:$0xff]
    %v245 = vld [vmem:[#allocation1 + $0x1b] sm:$0xff]
    %v246 = vld [vmem:[#allocation1 + $0x24] sm:$0xff]
    %v455 = vunpack.c.l.b16 %v30
    %v456 = vunpack.c.l.b16 %v31
    %v457 = vunpack.c.l.b16 %v32
    %v458 = vunpack.c.l.b16 %v33
    %v459 = vunpack.c.l.b16 %v34
    %v460 = vunpack.c.l.b16 %v35
    %v461 = vunpack.c.l.b16 %v36
    %v462 = vunpack.c.l.b16 %v37
    %v463 = vunpack.c.l.b16 %v38
    %v464 = vunpack.c.l.b16 %v39
    %v465 = vunpack.c.l.b16 %v40
    %v466 = vunpack.c.l.b16 %v41
    %v467 = vunpack.c.l.b16 %v42
    %v468 = vunpack.c.l.b16 %v43
    %v469 = vunpack.c.l.b16 %v44
    %v470 = vunpack.c.l.b16 %v45
    %v471 = vunpack.c.l.b16 %v46
    %v472 = vunpack.c.l.b16 %v47
    %v473 = vunpack.c.l.b16 %v48
    %v474 = vunpack.c.l.b16 %v49
    %v475 = vunpack.c.l.b16 %v50
    %v476 = vunpack.c.l.b16 %v51
    %v477 = vunpack.c.l.b16 %v52
    %v478 = vunpack.c.l.b16 %v53
    %v479 = vunpack.c.l.b16 %v54
    %v480 = vunpack.c.l.b16 %v55
    %v481 = vunpack.c.l.b16 %v56
    %v482 = vunpack.c.l.b16 %v57
    %v483 = vunpack.c.l.b16 %v58
    %v484 = vunpack.c.l.b16 %v59
    %v485 = vunpack.c.l.b16 %v60
    %v486 = vunpack.c.l.b16 %v61
    %v487 = vunpack.c.l.b16 %v62
    %v488 = vunpack.c.l.b16 %v63
    %v489 = vunpack.c.l.b16 %v64
    %v490 = vunpack.c.l.b16 %v65
    %v491 = vunpack.c.l.b16 %v66
    %v492 = vunpack.c.l.b16 %v67
    %v493 = vunpack.c.l.b16 %v68
    %v494 = vunpack.c.l.b16 %v69
    %v495 = vunpack.c.l.b16 %v70
    %v496 = vunpack.c.l.b16 %v71
    %v497 = vunpack.c.l.b16 %v72
    %v498 = vunpack.c.l.b16 %v73
    %v499 = vunpack.c.l.b16 %v74
    %v500 = vunpack.c.l.b16 %v75
    %v501 = vunpack.c.l.b16 %v76
    %v502 = vunpack.c.l.b16 %v77
    %v503 = vunpack.c.l.b16 %v78
    %v504 = vunpack.c.l.b16 %v79
    %v505 = vunpack.c.l.b16 %v80
    %v506 = vunpack.c.l.b16 %v81
    %v507 = vunpack.c.l.b16 %v82
    %v508 = vunpack.c.l.b16 %v83
    %v509 = vunpack.c.l.b16 %v84
    %v510 = vunpack.c.l.b16 %v85
    %v511 = vunpack.c.l.b16 %v86
    %v512 = vunpack.c.l.b16 %v87
    %v513 = vunpack.c.l.b16 %v88
    %v514 = vunpack.c.l.b16 %v89
    %v515 = vunpack.c.l.b16 %v90
    %v516 = vunpack.c.l.b16 %v91
    %v517 = vunpack.c.l.b16 %v92
    %v518 = vunpack.c.l.b16 %v93
    %v519 = vunpack.c.l.b16 %v94
    %v520 = vunpack.c.l.b16 %v95
    %v521 = vunpack.c.l.b16 %v96
    %v522 = vunpack.c.l.b16 %v97
    %v523 = vunpack.c.l.b16 %v98
    %v524 = vunpack.c.l.b16 %v99
    %v525 = vunpack.c.l.b16 %v100
    %v526 = vunpack.c.l.b16 %v101
    %v527 = vunpack.c.l.b16 %v102
    %v528 = vunpack.c.l.b16 %v103
    %v529 = vunpack.c.l.b16 %v104
    %v530 = vunpack.c.l.b16 %v105
    %v531 = vunpack.c.l.b16 %v106
    %v532 = vunpack.c.l.b16 %v107
    %v533 = vunpack.c.l.b16 %v108
    %v534 = vunpack.c.l.b16 %v109
    %v535 = vunpack.c.l.b16 %v110
    %v536 = vunpack.c.l.b16 %v111
    %v537 = vunpack.c.l.b16 %v112
    %v538 = vunpack.c.l.b16 %v113
    %v539 = vunpack.c.l.b16 %v114
    %v540 = vunpack.c.l.b16 %v115
    %v541 = vunpack.c.l.b16 %v116
    %v542 = vunpack.c.l.b16 %v117
    %v543 = vunpack.c.l.b16 %v118
    %v544 = vunpack.c.l.b16 %v119
    %v545 = vunpack.c.l.b16 %v120
    %v546 = vunpack.c.l.b16 %v121
    %v547 = vunpack.c.l.b16 %v122
    %v548 = vunpack.c.l.b16 %v123
    %v549 = vunpack.c.l.b16 %v124
    %v550 = vunpack.c.l.b16 %v125
    %v551 = vunpack.c.l.b16 %v126
    %v552 = vunpack.c.l.b16 %v127
    %v553 = vunpack.c.l.b16 %v128
    %v554 = vunpack.c.l.b16 %v129
    %v555 = vunpack.c.l.b16 %v130
    %v556 = vunpack.c.l.b16 %v131
    %v557 = vunpack.c.l.b16 %v132
    %v558 = vunpack.c.l.b16 %v133
    %v559 = vunpack.c.l.b16 %v134
    %v560 = vunpack.c.l.b16 %v135
    %v561 = vunpack.c.l.b16 %v136
    %v562 = vunpack.c.l.b16 %v137
    %v563 = vunpack.c.l.b16 %v138
    %v564 = vunpack.c.l.b16 %v139
    %v565 = vunpack.c.l.b16 %v140
    %v566 = vunpack.c.l.b16 %v141
    %v567 = vunpack.c.l.b16 %v142
    %v568 = vunpack.c.l.b16 %v143
    %v569 = vunpack.c.l.b16 %v144
    %v570 = vunpack.c.l.b16 %v145
    %v571 = vunpack.c.l.b16 %v146
    %v572 = vunpack.c.l.b16 %v147
    %v573 = vunpack.c.l.b16 %v148
    %v574 = vunpack.c.l.b16 %v149
    %v575 = vunpack.c.l.b16 %v150
    %v576 = vunpack.c.l.b16 %v151
    %v577 = vunpack.c.l.b16 %v152
    %v578 = vunpack.c.l.b16 %v153
    %v579 = vunpack.c.l.b16 %v154
    %v580 = vunpack.c.l.b16 %v155
    %v581 = vunpack.c.l.b16 %v156
    %v582 = vunpack.c.l.b16 %v157
    %v583 = vunpack.c.l.b16 %v158
    %v584 = vunpack.c.l.b16 %v159
    %v585 = vunpack.c.l.b16 %v160
    %v586 = vunpack.c.l.b16 %v161
    %v587 = vunpack.c.l.b16 %v162
    %v588 = vunpack.c.l.b16 %v163
    %v589 = vunpack.c.l.b16 %v164
    %v590 = vunpack.c.l.b16 %v165
    %v591 = vunpack.c.l.b16 %v166
    %v592 = vunpack.c.l.b16 %v167
    %v593 = vunpack.c.l.b16 %v168
    %v594 = vunpack.c.l.b16 %v169
    %v595 = vunpack.c.l.b16 %v170
    %v596 = vunpack.c.l.b16 %v171
    %v597 = vunpack.c.l.b16 %v172
    %v598 = vunpack.c.l.b16 %v173
    %v599 = vunpack.c.l.b16 %v174
    %v600 = vunpack.c.l.b16 %v175
    %v601 = vunpack.c.l.b16 %v176
    %v602 = vunpack.c.l.b16 %v177
    %v603 = vunpack.c.l.b16 %v178
    %v604 = vunpack.c.l.b16 %v179
    %v605 = vunpack.c.l.b16 %v180
    %v606 = vunpack.c.l.b16 %v181
    %v607 = vunpack.c.l.b16 %v182
    %v608 = vunpack.c.l.b16 %v183
    %v609 = vunpack.c.l.b16 %v184
    %v610 = vunpack.c.l.b16 %v185
    %v611 = vunpack.c.l.b16 %v186
    %v612 = vunpack.c.l.b16 %v187
    %v613 = vunpack.c.l.b16 %v188
    %v614 = vunpack.c.l.b16 %v189
    %v615 = vunpack.c.l.b16 %v190
    %v616 = vunpack.c.l.b16 %v191
    %v617 = vunpack.c.l.b16 %v192
    %v618 = vunpack.c.l.b16 %v193
    %v619 = vunpack.c.l.b16 %v194
    %v620 = vunpack.c.l.b16 %v195
    %v621 = vunpack.c.l.b16 %v196
    %v622 = vunpack.c.l.b16 %v197
    %v623 = vunpack.c.l.b16 %v198
    %v624 = vunpack.c.l.b16 %v199
    %v625 = vunpack.c.l.b16 %v200
    %v626 = vunpack.c.l.b16 %v201
    %v627 = vunpack.c.l.b16 %v202
    %v628 = vunpack.c.l.b16 %v203
    %v629 = vunpack.c.l.b16 %v204
    %v630 = vunpack.c.l.b16 %v205
    %v631 = vunpack.c.l.b16 %v206
    %v632 = vunpack.c.l.b16 %v207
    %v633 = vunpack.c.l.b16 %v208
    %v634 = vunpack.c.l.b16 %v209
    %v635 = vunpack.c.l.b16 %v210
    %v636 = vunpack.c.l.b16 %v211
    %v637 = vunpack.c.l.b16 %v212
    %v638 = vunpack.c.l.b16 %v213
    %v639 = vunpack.c.l.b16 %v214
    %v640 = vunpack.c.l.b16 %v215
    %v641 = vunpack.c.l.b16 %v216
    %v642 = vunpack.c.l.b16 %v217
    %v643 = vunpack.c.l.b16 %v218
    %v644 = vunpack.c.l.b16 %v219
    %v645 = vunpack.c.l.b16 %v220
    %v646 = vunpack.c.l.b16 %v221
    %v647 = vunpack.c.l.b16 %v222
    %v648 = vunpack.c.l.b16 %v223
    %v649 = vunpack.c.l.b16 %v224
    %v650 = vunpack.c.l.b16 %v225
    %v651 = vpack.c.b16 %v456, %v455
    %v652 = vpack.c.b16 %v458, %v457
    %v653 = vpack.c.b16 %v460, %v459
    %v654 = vpack.c.b16 %v462, %v461
    %v655 = vpack.c.b16 %v464, %v463
    %v656 = vpack.c.b16 %v466, %v465
    %v657 = vpack.c.b16 %v468, %v467
    %v658 = vpack.c.b16 %v470, %v469
    %v659 = vpack.c.b16 %v472, %v471
    %v660 = vpack.c.b16 %v474, %v473
    %v661 = vpack.c.b16 %v476, %v475
    %v662 = vpack.c.b16 %v478, %v477
    %v663 = vpack.c.b16 %v480, %v479
    %v664 = vpack.c.b16 %v482, %v481
    %v665 = vpack.c.b16 %v484, %v483
    %v666 = vpack.c.b16 %v486, %v485
    %v667 = vpack.c.b16 %v488, %v487
    %v668 = vpack.c.b16 %v490, %v489
    %v669 = vpack.c.b16 %v492, %v491
    %v670 = vpack.c.b16 %v494, %v493
    %v671 = vpack.c.b16 %v496, %v495
    %v672 = vpack.c.b16 %v498, %v497
    %v673 = vpack.c.b16 %v500, %v499
    %v674 = vpack.c.b16 %v502, %v501
    %v675 = vpack.c.b16 %v504, %v503
    %v676 = vpack.c.b16 %v506, %v505
    %v677 = vpack.c.b16 %v508, %v507
    %v678 = vpack.c.b16 %v510, %v509
    %v679 = vpack.c.b16 %v512, %v511
    %v680 = vpack.c.b16 %v514, %v513
    %v681 = vpack.c.b16 %v516, %v515
    %v682 = vpack.c.b16 %v518, %v517
    %v683 = vpack.c.b16 %v520, %v519
    %v684 = vpack.c.b16 %v522, %v521
    %v685 = vpack.c.b16 %v524, %v523
    %v686 = vpack.c.b16 %v526, %v525
    %v687 = vpack.c.b16 %v528, %v527
    %v688 = vpack.c.b16 %v530, %v529
    %v689 = vpack.c.b16 %v532, %v531
    %v690 = vpack.c.b16 %v534, %v533
    %v691 = vpack.c.b16 %v536, %v535
    %v692 = vpack.c.b16 %v538, %v537
    %v693 = vpack.c.b16 %v540, %v539
    %v694 = vpack.c.b16 %v542, %v541
    %v695 = vpack.c.b16 %v544, %v543
    %v696 = vpack.c.b16 %v546, %v545
    %v697 = vpack.c.b16 %v548, %v547
    %v698 = vpack.c.b16 %v550, %v549
    %v699 = vpack.c.b16 %v552, %v551
    %v700 = vpack.c.b16 %v554, %v553
    %v701 = vpack.c.b16 %v556, %v555
    %v702 = vpack.c.b16 %v558, %v557
    %v703 = vpack.c.b16 %v560, %v559
    %v704 = vpack.c.b16 %v562, %v561
    %v705 = vpack.c.b16 %v564, %v563
    %v706 = vpack.c.b16 %v566, %v565
    %v707 = vpack.c.b16 %v568, %v567
    %v708 = vpack.c.b16 %v570, %v569
    %v709 = vpack.c.b16 %v572, %v571
    %v710 = vpack.c.b16 %v574, %v573
    %v711 = vpack.c.b16 %v576, %v575
    %v712 = vpack.c.b16 %v578, %v577
    %v713 = vpack.c.b16 %v580, %v579
    %v714 = vpack.c.b16 %v582, %v581
    %v715 = vpack.c.b16 %v584, %v583
    %v716 = vpack.c.b16 %v586, %v585
    %v717 = vpack.c.b16 %v588, %v587
    %v718 = vpack.c.b16 %v590, %v589
    %v719 = vpack.c.b16 %v592, %v591
    %v720 = vpack.c.b16 %v594, %v593
    %v721 = vpack.c.b16 %v596, %v595
    %v722 = vpack.c.b16 %v598, %v597
    %v723 = vpack.c.b16 %v600, %v599
    %v724 = vpack.c.b16 %v602, %v601
    %v725 = vpack.c.b16 %v604, %v603
    %v726 = vpack.c.b16 %v606, %v605
    %v727 = vpack.c.b16 %v608, %v607
    %v728 = vpack.c.b16 %v610, %v609
    %v729 = vpack.c.b16 %v612, %v611
    %v730 = vpack.c.b16 %v614, %v613
    %v731 = vpack.c.b16 %v616, %v615
    %v732 = vpack.c.b16 %v618, %v617
    %v733 = vpack.c.b16 %v620, %v619
    %v734 = vpack.c.b16 %v622, %v621
    %v735 = vpack.c.b16 %v624, %v623
    %v736 = vpack.c.b16 %v626, %v625
    %v737 = vpack.c.b16 %v628, %v627
    %v738 = vpack.c.b16 %v630, %v629
    %v739 = vpack.c.b16 %v632, %v631
    %v740 = vpack.c.b16 %v634, %v633
    %v741 = vpack.c.b16 %v636, %v635
    %v742 = vpack.c.b16 %v638, %v637
    %v743 = vpack.c.b16 %v640, %v639
    %v744 = vpack.c.b16 %v642, %v641
    %v745 = vpack.c.b16 %v644, %v643
    %v746 = vpack.c.b16 %v646, %v645
    %v747 = vpack.c.b16 %v648, %v647
    %v748 = vpack.c.b16 %v650, %v649
    %vm847 = vcmask 261120
    %v848 = vsel %vm847, %v246, 0
    %850 = vmatpush.bf16.msra.mxu0 %v658
    %851 = vmatpush.bf16.msra.mxu0 %v657
    %852 = vmatpush.bf16.msra.mxu0 %v656
    %853 = vmatpush.bf16.msra.mxu0 %v655
    %854 = vmatpush.bf16.msra.mxu0 %v654
    %855 = vmatpush.bf16.msra.mxu0 %v653
    %856 = vmatpush.bf16.msra.mxu0 %v652
    %857 = vmatpush.bf16.msra.mxu0 %v651
    %858 = vmatmul.bf16.gmra.mxu0 %v232
    %v859 = vpop.f32.mrf.mxu0
    %v860 = vadd.f32 %v228, %v859
    %v861 = vpop.f32.mrf.mxu0
    %862 = vdwg.mxu0
    %863 = vmatpush.bf16.msra.mxu0 %v666
    %864 = vmatpush.bf16.msra.mxu0 %v665
    %865 = vmatpush.bf16.msra.mxu0 %v664
    %866 = vmatpush.bf16.msra.mxu0 %v663
    %867 = vmatpush.bf16.msra.mxu0 %v662
    %868 = vmatpush.bf16.msra.mxu0 %v661
    %869 = vmatpush.bf16.msra.mxu0 %v660
    %870 = vmatpush.bf16.msra.mxu0 %v659
    %871 = vmatmul.bf16.gmra.mxu0 %v233
    %v872 = vpop.f32.mrf.mxu0
    %v873 = vadd.f32 %v860, %v872
    %v874 = vpop.f32.mrf.mxu0
    %875 = vdwg.mxu0
    %876 = vmatpush.bf16.msra.mxu0 %v674
    %877 = vmatpush.bf16.msra.mxu0 %v673
    %878 = vmatpush.bf16.msra.mxu0 %v672
    %879 = vmatpush.bf16.msra.mxu0 %v671
    %880 = vmatpush.bf16.msra.mxu0 %v670
    %881 = vmatpush.bf16.msra.mxu0 %v669
    %882 = vmatpush.bf16.msra.mxu0 %v668
    %883 = vmatpush.bf16.msra.mxu0 %v667
    %884 = vmatmul.bf16.gmra.mxu0 %v234
    %v885 = vpop.f32.mrf.mxu0
    %v886 = vadd.f32 %v873, %v885
    %v887 = vpop.f32.mrf.mxu0
    %888 = vdwg.mxu0
    %889 = vmatpush.bf16.msra.mxu0 %v682
    %890 = vmatpush.bf16.msra.mxu0 %v681
    %891 = vmatpush.bf16.msra.mxu0 %v680
    %892 = vmatpush.bf16.msra.mxu0 %v679
    %893 = vmatpush.bf16.msra.mxu0 %v678
    %894 = vmatpush.bf16.msra.mxu0 %v677
    %895 = vmatpush.bf16.msra.mxu0 %v676
    %896 = vmatpush.bf16.msra.mxu0 %v675
    %897 = vmatmul.bf16.gmra.mxu0 %v235
    %v898 = vpop.f32.mrf.mxu0
    %v899 = vadd.f32 %v886, %v898
    %v900 = vpop.f32.mrf.mxu0
    %901 = vdwg.mxu0
    %902 = vmatpush.bf16.msra.mxu0 %v690
    %903 = vmatpush.bf16.msra.mxu0 %v689
    %904 = vmatpush.bf16.msra.mxu0 %v688
    %905 = vmatpush.bf16.msra.mxu0 %v687
    %906 = vmatpush.bf16.msra.mxu0 %v686
    %907 = vmatpush.bf16.msra.mxu0 %v685
    %908 = vmatpush.bf16.msra.mxu0 %v684
    %909 = vmatpush.bf16.msra.mxu0 %v683
    %910 = vmatmul.bf16.gmra.mxu0 %v236
    %v911 = vpop.f32.mrf.mxu0
    %v912 = vadd.f32 %v899, %v911
    %v913 = vpop.f32.mrf.mxu0
    %914 = vdwg.mxu0
    %915 = vmatpush.bf16.msra.mxu0 %v698
    %916 = vmatpush.bf16.msra.mxu0 %v697
    %917 = vmatpush.bf16.msra.mxu0 %v696
    %918 = vmatpush.bf16.msra.mxu0 %v695
    %919 = vmatpush.bf16.msra.mxu0 %v694
    %920 = vmatpush.bf16.msra.mxu0 %v693
    %921 = vmatpush.bf16.msra.mxu0 %v692
    %922 = vmatpush.bf16.msra.mxu0 %v691
    %923 = vmatmul.bf16.gmra.mxu0 %v237
    %v924 = vpop.f32.mrf.mxu0
    %v925 = vadd.f32 %v912, %v924
    %v926 = vpop.f32.mrf.mxu0
    %927 = vdwg.mxu0
    %928 = vmatpush.bf16.msra.mxu0 %v706
    %929 = vmatpush.bf16.msra.mxu0 %v705
    %930 = vmatpush.bf16.msra.mxu0 %v704
    %931 = vmatpush.bf16.msra.mxu0 %v703
    %932 = vmatpush.bf16.msra.mxu0 %v702
    %933 = vmatpush.bf16.msra.mxu0 %v701
    %934 = vmatpush.bf16.msra.mxu0 %v700
    %935 = vmatpush.bf16.msra.mxu0 %v699
    %936 = vmatmul.bf16.gmra.mxu0 %v238
    %v937 = vpop.f32.mrf.mxu0
    %v938 = vadd.f32 %v925, %v937
    %v939 = vpop.f32.mrf.mxu0
    %940 = vdwg.mxu0
    %941 = vmatpush.bf16.msra.mxu0 %v714
    %942 = vmatpush.bf16.msra.mxu0 %v713
    %943 = vmatpush.bf16.msra.mxu0 %v712
    %944 = vmatpush.bf16.msra.mxu0 %v711
    %945 = vmatpush.bf16.msra.mxu0 %v710
    %946 = vmatpush.bf16.msra.mxu0 %v709
    %947 = vmatpush.bf16.msra.mxu0 %v708
    %948 = vmatpush.bf16.msra.mxu0 %v707
    %949 = vmatmul.bf16.gmra.mxu0 %v239
    %v950 = vpop.f32.mrf.mxu0
    %v951 = vadd.f32 %v938, %v950
    %v952 = vpop.f32.mrf.mxu0
    %953 = vdwg.mxu0
    %954 = vmatpush.bf16.msra.mxu0 %v722
    %955 = vmatpush.bf16.msra.mxu0 %v721
    %956 = vmatpush.bf16.msra.mxu0 %v720
    %957 = vmatpush.bf16.msra.mxu0 %v719
    %958 = vmatpush.bf16.msra.mxu0 %v718
    %959 = vmatpush.bf16.msra.mxu0 %v717
    %960 = vmatpush.bf16.msra.mxu0 %v716
    %961 = vmatpush.bf16.msra.mxu0 %v715
    %962 = vmatmul.bf16.gmra.mxu0 %v242
    %v963 = vpop.f32.mrf.mxu0
    %v964 = vadd.f32 %v951, %v963
    %v965 = vpop.f32.mrf.mxu0
    %966 = vdwg.mxu0
    %967 = vmatpush.bf16.msra.mxu0 %v730
    %968 = vmatpush.bf16.msra.mxu0 %v729
    %969 = vmatpush.bf16.msra.mxu0 %v728
    %970 = vmatpush.bf16.msra.mxu0 %v727
    %971 = vmatpush.bf16.msra.mxu0 %v726
    %972 = vmatpush.bf16.msra.mxu0 %v725
    %973 = vmatpush.bf16.msra.mxu0 %v724
    %974 = vmatpush.bf16.msra.mxu0 %v723
    %975 = vmatmul.bf16.gmra.mxu0 %v243
    %v976 = vpop.f32.mrf.mxu0
    %v977 = vadd.f32 %v964, %v976
    %v978 = vpop.f32.mrf.mxu0
    %979 = vdwg.mxu0
    %980 = vmatpush.bf16.msra.mxu0 %v738
    %981 = vmatpush.bf16.msra.mxu0 %v737
    %982 = vmatpush.bf16.msra.mxu0 %v736
    %983 = vmatpush.bf16.msra.mxu0 %v735
    %984 = vmatpush.bf16.msra.mxu0 %v734
    %985 = vmatpush.bf16.msra.mxu0 %v733
    %986 = vmatpush.bf16.msra.mxu0 %v732
    %987 = vmatpush.bf16.msra.mxu0 %v731
    %988 = vmatmul.bf16.gmra.mxu0 %v244
    %v989 = vpop.f32.mrf.mxu0
    %v990 = vadd.f32 %v977, %v989
    %v991 = vpop.f32.mrf.mxu0
    %992 = vdwg.mxu0
    %993 = vmatpush.bf16.msra.mxu0 %v746
    %994 = vmatpush.bf16.msra.mxu0 %v745
    %995 = vmatpush.bf16.msra.mxu0 %v744
    %996 = vmatpush.bf16.msra.mxu0 %v743
    %997 = vmatpush.bf16.msra.mxu0 %v742
    %998 = vmatpush.bf16.msra.mxu0 %v741
    %999 = vmatpush.bf16.msra.mxu0 %v740
    %1000 = vmatpush.bf16.msra.mxu0 %v739
    %1001 = vmatmul.bf16.gmra.mxu0 %v245
    %v1002 = vpop.f32.mrf.mxu0
    %v1003 = vadd.f32 %v990, %v1002
    %v1004 = vpop.f32.mrf.mxu0
    %1005 = vdwg.mxu0
    %1006 = vmatpush.bf16.msra.mxu0 0
    %1007 = vmatpush.bf16.msra.mxu0 0
    %1008 = vmatpush.bf16.msra.mxu0 0
    %1009 = vmatpush.bf16.msra.mxu0 0
    %1010 = vmatpush.bf16.msra.mxu0 0
    %1011 = vmatpush.bf16.msra.mxu0 0
    %1012 = vmatpush.bf16.msra.mxu0 %v748
    %1013 = vmatpush.bf16.msra.mxu0 %v747
    %1014 = vmatmul.bf16.gmra.mxu0 %v848
    %v1015 = vpop.f32.mrf.mxu0
    %v1016 = vadd.f32 %v1003, %v1015
    %v1017 = vpop.f32.mrf.mxu0
    %1018 = vdwg.mxu0
    %v1019 = vmax.f32 %v1016, 0.0
    %v1020 = vpack.c.bf16 %v1019, %v1019
    %v1021 = vld [vmem:[%s3] sm:$0xf]
    %v1022 = vld [vmem:[%s3 + $0x4] sm:$0xf]
    %v1023 = vld [vmem:[%s3 + $0x8] sm:$0xf]
    %v1024 = vld [vmem:[%s3 + $0xc] sm:$0xf]
    %v1025 = vld [vmem:[%s3 + $0x10] sm:$0xf]
    %v1026 = vld [vmem:[%s3 + $0x14] sm:$0xf]
    %v1027 = vld [vmem:[%s3 + $0x18] sm:$0xf]
    %v1028 = vld [vmem:[%s3 + $0x1c] sm:$0xf]
    %v1029 = vld [vmem:[%s3 + $0x20] sm:$0xf]
    %v1030 = vld [vmem:[%s3 + $0x24] sm:$0xf]
    %v1031 = vld [vmem:[%s3 + $0x28] sm:$0xf]
    %v1032 = vld [vmem:[%s3 + $0x2c] sm:$0xf]
    %v1033 = vld [vmem:[%s3 + $0x30] sm:$0xf]
    %v1034 = vld [vmem:[%s3 + $0x34] sm:$0xf]
    %v1035 = vld [vmem:[%s3 + $0x38] sm:$0xf]
    %v1036 = vld [vmem:[%s3 + $0x3c] sm:$0xf]
    %v1037 = vld [vmem:[%s4] sm:$0x1]
    %v1039 = vperm.slane %v1037, 0
    %v1057 = vunpack.c.l.b16 %v1021
    %v1058 = vunpack.c.l.b16 %v1022
    %v1059 = vunpack.c.l.b16 %v1023
    %v1060 = vunpack.c.l.b16 %v1024
    %v1061 = vunpack.c.l.b16 %v1025
    %v1062 = vunpack.c.l.b16 %v1026
    %v1063 = vunpack.c.l.b16 %v1027
    %v1064 = vunpack.c.l.b16 %v1028
    %v1065 = vunpack.c.l.b16 %v1029
    %v1066 = vunpack.c.l.b16 %v1030
    %v1067 = vunpack.c.l.b16 %v1031
    %v1068 = vunpack.c.l.b16 %v1032
    %v1069 = vunpack.c.l.b16 %v1033
    %v1070 = vunpack.c.l.b16 %v1034
    %v1071 = vunpack.c.l.b16 %v1035
    %v1072 = vunpack.c.l.b16 %v1036
    %v1073 = vpack.c.b16 %v1058, %v1057
    %v1074 = vpack.c.b16 %v1060, %v1059
    %v1075 = vpack.c.b16 %v1062, %v1061
    %v1076 = vpack.c.b16 %v1064, %v1063
    %v1077 = vpack.c.b16 %v1066, %v1065
    %v1078 = vpack.c.b16 %v1068, %v1067
    %v1079 = vpack.c.b16 %v1070, %v1069
    %v1080 = vpack.c.b16 %v1072, %v1071
    %1089 = vmatpush.bf16.msra.mxu0 %v1080
    %1090 = vmatpush.bf16.msra.mxu0 %v1079
    %1091 = vmatpush.bf16.msra.mxu0 %v1078
    %1092 = vmatpush.bf16.msra.mxu0 %v1077
    %1093 = vmatpush.bf16.msra.mxu0 %v1076
    %1094 = vmatpush.bf16.msra.mxu0 %v1075
    %1095 = vmatpush.bf16.msra.mxu0 %v1074
    %1096 = vmatpush.bf16.msra.mxu0 %v1073
    %1097 = vmatmul.bf16.gmra.mxu0 %v1020
    %v1098 = vpop.f32.mrf.mxu0
    %v1099 = vadd.f32 %v1039, %v1098
    %v1100 = vpop.f32.mrf.mxu0
    %1101 = vdwg.mxu0
    %v1102 = vmax.f32 %v1099, 0.0
    %v1103 = vpack.c.bf16 %v1102, %v1102
    %v1104 = vld [vmem:[%s5] sm:$0xf]
    %v1105 = vld [vmem:[%s5 + $0x4] sm:$0xf]
    %v1106 = vld [vmem:[%s5 + $0x8] sm:$0xf]
    %v1107 = vld [vmem:[%s5 + $0xc] sm:$0xf]
    %v1108 = vld [vmem:[%s5 + $0x10] sm:$0xf]
    %v1109 = vld [vmem:[%s5 + $0x14] sm:$0xf]
    %v1110 = vld [vmem:[%s5 + $0x18] sm:$0xf]
    %v1111 = vld [vmem:[%s5 + $0x1c] sm:$0xf]
    %v1112 = vld [vmem:[%s5 + $0x20] sm:$0xf]
    %v1113 = vld [vmem:[%s5 + $0x24] sm:$0xf]
    %v1114 = vld [vmem:[%s5 + $0x28] sm:$0xf]
    %v1115 = vld [vmem:[%s5 + $0x2c] sm:$0xf]
    %v1116 = vld [vmem:[%s5 + $0x30] sm:$0xf]
    %v1117 = vld [vmem:[%s5 + $0x34] sm:$0xf]
    %v1118 = vld [vmem:[%s5 + $0x38] sm:$0xf]
    %v1119 = vld [vmem:[%s5 + $0x3c] sm:$0xf]
    %v1120 = vld [vmem:[%s6] sm:$0x1]
    %v1122 = vperm.slane %v1120, 0
    %v1140 = vunpack.c.l.b16 %v1104
    %v1141 = vunpack.c.l.b16 %v1105
    %v1142 = vunpack.c.l.b16 %v1106
    %v1143 = vunpack.c.l.b16 %v1107
    %v1144 = vunpack.c.l.b16 %v1108
    %v1145 = vunpack.c.l.b16 %v1109
    %v1146 = vunpack.c.l.b16 %v1110
    %v1147 = vunpack.c.l.b16 %v1111
    %v1148 = vunpack.c.l.b16 %v1112
    %v1149 = vunpack.c.l.b16 %v1113
    %v1150 = vunpack.c.l.b16 %v1114
    %v1151 = vunpack.c.l.b16 %v1115
    %v1152 = vunpack.c.l.b16 %v1116
    %v1153 = vunpack.c.l.b16 %v1117
    %v1154 = vunpack.c.l.b16 %v1118
    %v1155 = vunpack.c.l.b16 %v1119
    %v1156 = vpack.c.b16 %v1141, %v1140
    %v1157 = vpack.c.b16 %v1143, %v1142
    %v1158 = vpack.c.b16 %v1145, %v1144
    %v1159 = vpack.c.b16 %v1147, %v1146
    %v1160 = vpack.c.b16 %v1149, %v1148
    %v1161 = vpack.c.b16 %v1151, %v1150
    %v1162 = vpack.c.b16 %v1153, %v1152
    %v1163 = vpack.c.b16 %v1155, %v1154
    %1172 = vmatpush.bf16.msra.mxu0 %v1163
    %1173 = vmatpush.bf16.msra.mxu0 %v1162
    %1174 = vmatpush.bf16.msra.mxu0 %v1161
    %1175 = vmatpush.bf16.msra.mxu0 %v1160
    %1176 = vmatpush.bf16.msra.mxu0 %v1159
    %1177 = vmatpush.bf16.msra.mxu0 %v1158
    %1178 = vmatpush.bf16.msra.mxu0 %v1157
    %1179 = vmatpush.bf16.msra.mxu0 %v1156
    %1180 = vmatmul.bf16.gmra.mxu0 %v1103
    %v1181 = vpop.f32.mrf.mxu0
    %v1182 = vadd.f32 %v1122, %v1181
    %v1183 = vpop.f32.mrf.mxu0
    %1184 = vdwg.mxu0
    %vm1185 = vcmask 74752
    %1186 = vst.msk [vmem:[#allocation2] sm:$0x3] %vm1185, %v1182
    // Predicated region
    $region30: #{vgg_forward.5} parent=1 // pred_check
      _
    $region31: #{vgg_forward.5} parent=1 // pred_check_branch
      %1188 = sbr.rel (0) target = $region33
    $region32: #{vgg_forward.5} parent=1 // pred_region
      %1190 = vsyncadd [#allocation3], 0
      %s1192 = sshll.u32 [#allocation2], 4
      %s1193 = int_to_ptr.vmem [resolvable:$true] %s1192
      %s1194 = sshll.u32 %s7, 4
      %s1195 = int_to_ptr.hbm [resolvable:$true] %s1194
      %1197 = dma.vmem_to_hbm [thread:$0]  %s1193, 32, %s1195, [#allocation3]
    $region33: #{vgg_forward.5} parent=1 // pred_fallthru
      _
    // Predicated region
    $region34: #{vgg_forward.5} parent=1 // pred_check
      _
    $region35: #{vgg_forward.5} parent=1 // pred_check_branch
      %1199 = sbr.rel (0) target = $region37
    $region36: #{vgg_forward.5} parent=1 // pred_region
      %1201 = dma.done [#allocation3], 32
    $region37: #{vgg_forward.5} parent=1 // pred_fallthru
      _
    %1202 = vsyncpa [#allocation3], 1

</llo_original>
